<compile_context>
chip_gen: v6e
topology: v6e:2x2x1
jax: 0.10.0
libtpu: 0.0.40
codegen_flags: <defaults>
</compile_context>

<pallas_src>
import jax
import jax.numpy as jnp
from jax.experimental import pallas as pl
from jax.experimental.pallas import tpu as pltpu

N_INPUTS = 943
N_HIDDEN = 10
N_OUTPUTS = 4760


def mlp_kernel(x_ref, w1t_ref, b1_ref, w2t_ref, b2_ref, o_ref):
    # fc1 + tanh. Dropout has p=0 -> identity, so it is omitted.
    h = jnp.tanh(
        jnp.dot(x_ref[...], w1t_ref[...], preferred_element_type=jnp.float32)
        + b1_ref[...]
    )
    # fc2 over the full (unpadded) output width in one shot.
    o_ref[...] = (
        jnp.dot(h, w2t_ref[...], preferred_element_type=jnp.float32) + b2_ref[...]
    )


def prepare_params(w1, b1, w2, b2):
    """One-time reshaping of PyTorch-layout params into kernel layout.

    w1: (H, F), b1: (H,), w2: (N, H), b2: (N,)  ->  (F,H), (1,H), (H,N), (1,N)
    """
    w1t = jnp.asarray(w1, jnp.float32).T                    # (F, H)
    b1_r = jnp.asarray(b1, jnp.float32).reshape(1, -1)      # (1, H)
    w2t = jnp.asarray(w2, jnp.float32).T                    # (H, N)
    b2_r = jnp.asarray(b2, jnp.float32).reshape(1, -1)      # (1, N)
    return w1t, b1_r, w2t, b2_r


def _forward_impl(x, w1t, b1_r, w2t, b2_r):
    B, F = x.shape
    H = w1t.shape[1]
    N = w2t.shape[1]

    return pl.pallas_call(
        mlp_kernel,
        out_shape=jax.ShapeDtypeStruct((B, N), jnp.float32),
        grid_spec=pltpu.PrefetchScalarGridSpec(
            num_scalar_prefetch=0,
            grid=(1,),
            in_specs=[
                pl.BlockSpec((B, F), lambda i: (0, 0)),  # x (full)
                pl.BlockSpec((F, H), lambda i: (0, 0)),  # fc1 weight^T (full)
                pl.BlockSpec((1, H), lambda i: (0, 0)),  # fc1 bias
                pl.BlockSpec((H, N), lambda i: (0, 0)),  # fc2 weight^T (full)
                pl.BlockSpec((1, N), lambda i: (0, 0)),  # fc2 bias
            ],
            out_specs=pl.BlockSpec((B, N), lambda i: (0, 0)),  # full output
        ),
        compiler_params=pltpu.CompilerParams(
            dimension_semantics=("arbitrary",),
        ),
    )(x, w1t, b1_r, w2t, b2_r)


network_forward = jax.jit(_forward_impl)


def init_params(key, hidden_units=N_HIDDEN):
    """Deterministic init mirroring nn.Linear's U(-1/sqrt(fan_in), 1/sqrt(fan_in))."""
    k1, k2, k3, k4 = jax.random.split(key, 4)
    lim1 = 1.0 / jnp.sqrt(jnp.float32(N_INPUTS))
    lim2 = 1.0 / jnp.sqrt(jnp.float32(hidden_units))
    w1 = jax.random.uniform(k1, (hidden_units, N_INPUTS), jnp.float32, -lim1, lim1)
    b1 = jax.random.uniform(k2, (hidden_units,), jnp.float32, -lim1, lim1)
    w2 = jax.random.uniform(k3, (N_OUTPUTS, hidden_units), jnp.float32, -lim2, lim2)
    b2 = jax.random.uniform(k4, (N_OUTPUTS,), jnp.float32, -lim2, lim2)
    return w1, b1, w2, b2


if __name__ == "__main__":
    key = jax.random.PRNGKey(0)
    kx, kp = jax.random.split(key)

    B = 8  # small batch; feature/output dims are fixed by the module (943 -> 4760)
    x = jax.random.normal(kx, (B, N_INPUTS), jnp.float32)
    w1, b1, w2, b2 = init_params(kp)

    # One-time layout prep (transposes / casts hoisted out of the forward path).
    params = prepare_params(w1, b1, w2, b2)

    y = network_forward(x, *params)
    y = jax.block_until_ready(y)

    # Pure-JAX reference (dropout p=0 -> identity).
    ref = jnp.tanh(x @ w1.T + b1) @ w2.T + b2
    assert y.shape == (B, N_OUTPUTS)
    assert jnp.allclose(y, ref, atol=1e-4, rtol=1e-4)

    print("KERNEL_OK")
</pallas_src>

<mosaic_0001>
module attributes {stable_mosaic.version = 11 : i64} {
  func.func @mlp_kernel(%arg0: i32, %arg1: memref<8x943xf32, #tpu.memory_space<vmem>>, %arg2: memref<943x10xf32, #tpu.memory_space<vmem>>, %arg3: memref<1x10xf32, #tpu.memory_space<vmem>>, %arg4: memref<10x4760xf32, #tpu.memory_space<vmem>>, %arg5: memref<1x4760xf32, #tpu.memory_space<vmem>>, %arg6: memref<8x4760xf32, #tpu.memory_space<vmem>>) attributes {dimension_semantics = [#tpu.dimension_semantics<arbitrary>], iteration_bounds = array<i64: 1>, scalar_prefetch = 0 : i64, scratch_operands = 0 : i64, tpu.core_type = #tpu.core_type<tc>, window_params = [{pipeline_mode = #tpu.pipeline_mode<synchronous>, transform_indices = @transform_0, window_bounds = array<i64: 8, 943>}, {pipeline_mode = #tpu.pipeline_mode<synchronous>, transform_indices = @transform_1, window_bounds = array<i64: 943, 10>}, {pipeline_mode = #tpu.pipeline_mode<synchronous>, transform_indices = @transform_2, window_bounds = array<i64: 1, 10>}, {pipeline_mode = #tpu.pipeline_mode<synchronous>, transform_indices = @transform_3, window_bounds = array<i64: 10, 4760>}, {pipeline_mode = #tpu.pipeline_mode<synchronous>, transform_indices = @transform_4, window_bounds = array<i64: 1, 4760>}, {pipeline_mode = #tpu.pipeline_mode<synchronous>, transform_indices = @transform_5, window_bounds = array<i64: 8, 4760>}]} {
    %c0 = arith.constant 0 : index
    %c0_0 = arith.constant 0 : index
    %0 = vector.load %arg1[%c0, %c0_0] : memref<8x943xf32, #tpu.memory_space<vmem>>, vector<8x943xf32>
    %c0_1 = arith.constant 0 : index
    %c0_2 = arith.constant 0 : index
    %1 = vector.load %arg2[%c0_1, %c0_2] : memref<943x10xf32, #tpu.memory_space<vmem>>, vector<943x10xf32>
    %cst = arith.constant dense<0.000000e+00> : vector<8x10xf32>
    %2 = tpu.matmul %0, %1, %cst {dimension_numbers = #tpu.dot_dimension_numbers<[1], [0], [0], [1], [0, 0, 1, 1], [], []>} : vector<8x943xf32>, vector<943x10xf32>, vector<8x10xf32> -> vector<8x10xf32>
    %c0_3 = arith.constant 0 : index
    %c0_4 = arith.constant 0 : index
    %3 = vector.load %arg3[%c0_3, %c0_4] : memref<1x10xf32, #tpu.memory_space<vmem>>, vector<1x10xf32>
    %4 = vector.broadcast %3 : vector<1x10xf32> to vector<8x10xf32>
    %5 = arith.addf %2, %4 : vector<8x10xf32>
    %6 = math.tanh %5 : vector<8x10xf32>
    %c0_5 = arith.constant 0 : index
    %c0_6 = arith.constant 0 : index
    %7 = vector.load %arg4[%c0_5, %c0_6] : memref<10x4760xf32, #tpu.memory_space<vmem>>, vector<10x4760xf32>
    %cst_7 = arith.constant dense<0.000000e+00> : vector<8x4760xf32>
    %8 = tpu.matmul %6, %7, %cst_7 {dimension_numbers = #tpu.dot_dimension_numbers<[1], [0], [0], [1], [0, 0, 1, 1], [], []>} : vector<8x10xf32>, vector<10x4760xf32>, vector<8x4760xf32> -> vector<8x4760xf32>
    %c0_8 = arith.constant 0 : index
    %c0_9 = arith.constant 0 : index
    %9 = vector.load %arg5[%c0_8, %c0_9] : memref<1x4760xf32, #tpu.memory_space<vmem>>, vector<1x4760xf32>
    %10 = vector.broadcast %9 : vector<1x4760xf32> to vector<8x4760xf32>
    %11 = arith.addf %8, %10 : vector<8x4760xf32>
    %c0_10 = arith.constant 0 : index
    %c0_11 = arith.constant 0 : index
    %12 = vector.load %arg6[%c0_10, %c0_11] : memref<8x4760xf32, #tpu.memory_space<vmem>>, vector<8x4760xf32>
    tpu.vector_store %arg6[%c0_10, %c0_11], %11 {strides = array<i32>} : memref<8x4760xf32, #tpu.memory_space<vmem>>, vector<8x4760xf32>,
    return
  }
  func.func @transform_0(%arg0: i32) -> (i32, i32) {
    %c0_i32 = arith.constant 0 : i32
    %c0_i32_0 = arith.constant 0 : i32
    %c0_i32_1 = arith.constant 0 : i32
    return %c0_i32, %c0_i32_0 : i32, i32
  }
  func.func @transform_1(%arg0: i32) -> (i32, i32) {
    %c0_i32 = arith.constant 0 : i32
    %c0_i32_0 = arith.constant 0 : i32
    %c0_i32_1 = arith.constant 0 : i32
    return %c0_i32, %c0_i32_0 : i32, i32
  }
  func.func @transform_2(%arg0: i32) -> (i32, i32) {
    %c0_i32 = arith.constant 0 : i32
    %c0_i32_0 = arith.constant 0 : i32
    %c0_i32_1 = arith.constant 0 : i32
    return %c0_i32, %c0_i32_0 : i32, i32
  }
  func.func @transform_3(%arg0: i32) -> (i32, i32) {
    %c0_i32 = arith.constant 0 : i32
    %c0_i32_0 = arith.constant 0 : i32
    %c0_i32_1 = arith.constant 0 : i32
    return %c0_i32, %c0_i32_0 : i32, i32
  }
  func.func @transform_4(%arg0: i32) -> (i32, i32) {
    %c0_i32 = arith.constant 0 : i32
    %c0_i32_0 = arith.constant 0 : i32
    %c0_i32_1 = arith.constant 0 : i32
    return %c0_i32, %c0_i32_0 : i32, i32
  }
  func.func @transform_5(%arg0: i32) -> (i32, i32) {
    %c0_i32 = arith.constant 0 : i32
    %c0_i32_0 = arith.constant 0 : i32
    %c0_i32_1 = arith.constant 0 : i32
    return %c0_i32, %c0_i32_0 : i32, i32
  }
}

</mosaic_0001>

<llo_original>
// kernel: _forward_impl.1
$region0: #{_forward_impl.1}
  #allocation0 [shape = 'u32[]', space=smem, size = 0x4, offset = 0x4, fixed_abs, tag = 'smem constant byte address 0x4 - core index']
  #allocation1 [shape = 'u32[144,128]{1,0:T(1,128)}', space=vmem, size = 0x12000, scoped, tag = 'internal scratch']
  %s0 = inlined_call_operand.vmem [shape: f32[8,943], index: 0, kind: input, shape index: {}]
  %s1 = inlined_call_operand.vmem [shape: f32[943,10], index: 1, kind: input, shape index: {}]
  %s2 = inlined_call_operand.vmem [shape: f32[1,10], index: 2, kind: input, shape index: {}]
  %s3 = inlined_call_operand.vmem [shape: f32[10,4760], index: 3, kind: input, shape index: {}]
  %s4 = inlined_call_operand.vmem [shape: f32[1,4760], index: 4, kind: input, shape index: {}]
  %s5 = inlined_call_operand.hbm [shape: f32[8,4760], index: 5, kind: output, shape index: {}]
  %s6 = sld [smem:[#allocation0]]
  $region30: #{_forward_impl.1} parent=0
    _
  %s8 = ssub.s32 1, %s6
  %s9 = scalar_select 0, %s8, %s6
  $region1: #{_forward_impl.1} parent=0
    #allocation2 [shape = 'u8[155648]{0}', space=vmem, size = 0x26000, scoped, tag = 'output window, operand 0, single buffered']
    #allocation3 [shape = 's32[1]{0}', space=sflag, size = 0x4, scoped, tag = 'scoped memory for _forward_impl.1']
    %10 = vsyncpa [#allocation3], 0
    // Predicated region
    $region2: #{_forward_impl.1} parent=1 // pred_check
      _
    $region3: #{_forward_impl.1} parent=1 // pred_check_branch
      %12 = sbr.rel (0) target = $region5
    $region4: #{_forward_impl.1} parent=1 // pred_region
      _
    $region5: #{_forward_impl.1} parent=1 // pred_fallthru
      _
    // Predicated region
    $region6: #{_forward_impl.1} parent=1 // pred_check
      _
    $region7: #{_forward_impl.1} parent=1 // pred_check_branch
      %14 = sbr.rel (0) target = $region9
    $region8: #{_forward_impl.1} parent=1 // pred_region
      _
    $region9: #{_forward_impl.1} parent=1 // pred_fallthru
      _
    // Predicated region
    $region10: #{_forward_impl.1} parent=1 // pred_check
      _
    $region11: #{_forward_impl.1} parent=1 // pred_check_branch
      %16 = sbr.rel (0) target = $region13
    $region12: #{_forward_impl.1} parent=1 // pred_region
      _
    $region13: #{_forward_impl.1} parent=1 // pred_fallthru
      _
    // Predicated region
    $region14: #{_forward_impl.1} parent=1 // pred_check
      _
    $region15: #{_forward_impl.1} parent=1 // pred_check_branch
      %18 = sbr.rel (0) target = $region17
    $region16: #{_forward_impl.1} parent=1 // pred_region
      _
    $region17: #{_forward_impl.1} parent=1 // pred_fallthru
      _
    // Predicated region
    $region18: #{_forward_impl.1} parent=1 // pred_check
      _
    $region19: #{_forward_impl.1} parent=1 // pred_check_branch
      %20 = sbr.rel (0) target = $region21
    $region20: #{_forward_impl.1} parent=1 // pred_region
      _
    $region21: #{_forward_impl.1} parent=1 // pred_fallthru
      _
    %v21 = vld [vmem:[%s0] sm:$0xff]
    %v22 = vld [vmem:[%s0 + $0x8] sm:$0xff]
    %v23 = vld [vmem:[%s0 + $0x10] sm:$0xff]
    %v24 = vld [vmem:[%s0 + $0x18] sm:$0xff]
    %v25 = vld [vmem:[%s0 + $0x20] sm:$0xff]
    %v26 = vld [vmem:[%s0 + $0x28] sm:$0xff]
    %v27 = vld [vmem:[%s0 + $0x30] sm:$0xff]
    %v28 = vld [vmem:[%s0 + $0x38] sm:$0xff]
    %v29 = vld [vmem:[%s1] sm:$0xff]
    %v30 = vld [vmem:[%s1 + $0x8] sm:$0xff]
    %v31 = vld [vmem:[%s1 + $0x10] sm:$0xff]
    %v32 = vld [vmem:[%s1 + $0x18] sm:$0xff]
    %v33 = vld [vmem:[%s1 + $0x20] sm:$0xff]
    %v34 = vld [vmem:[%s1 + $0x28] sm:$0xff]
    %v35 = vld [vmem:[%s1 + $0x30] sm:$0xff]
    %v36 = vld [vmem:[%s1 + $0x38] sm:$0xff]
    %v37 = vld [vmem:[%s1 + $0x40] sm:$0xff]
    %v38 = vld [vmem:[%s1 + $0x48] sm:$0xff]
    %v39 = vld [vmem:[%s1 + $0x50] sm:$0xff]
    %v40 = vld [vmem:[%s1 + $0x58] sm:$0xff]
    %v41 = vld [vmem:[%s1 + $0x60] sm:$0xff]
    %v42 = vld [vmem:[%s1 + $0x68] sm:$0xff]
    %v43 = vld [vmem:[%s1 + $0x70] sm:$0xff]
    %v44 = vld [vmem:[%s1 + $0x78] sm:$0xff]
    %v45 = vld [vmem:[%s1 + $0x80] sm:$0xff]
    %v46 = vld [vmem:[%s1 + $0x88] sm:$0xff]
    %v47 = vld [vmem:[%s1 + $0x90] sm:$0xff]
    %v48 = vld [vmem:[%s1 + $0x98] sm:$0xff]
    %v49 = vld [vmem:[%s1 + $0xa0] sm:$0xff]
    %v50 = vld [vmem:[%s1 + $0xa8] sm:$0xff]
    %v51 = vld [vmem:[%s1 + $0xb0] sm:$0xff]
    %v52 = vld [vmem:[%s1 + $0xb8] sm:$0xff]
    %v53 = vld [vmem:[%s1 + $0xc0] sm:$0xff]
    %v54 = vld [vmem:[%s1 + $0xc8] sm:$0xff]
    %v55 = vld [vmem:[%s1 + $0xd0] sm:$0xff]
    %v56 = vld [vmem:[%s1 + $0xd8] sm:$0xff]
    %v57 = vld [vmem:[%s1 + $0xe0] sm:$0xff]
    %v58 = vld [vmem:[%s1 + $0xe8] sm:$0xff]
    %v59 = vld [vmem:[%s1 + $0xf0] sm:$0xff]
    %v60 = vld [vmem:[%s1 + $0xf8] sm:$0xff]
    %v61 = vld [vmem:[%s1 + $0x100] sm:$0xff]
    %v62 = vld [vmem:[%s1 + $0x108] sm:$0xff]
    %v63 = vld [vmem:[%s1 + $0x110] sm:$0xff]
    %v64 = vld [vmem:[%s1 + $0x118] sm:$0xff]
    %v65 = vld [vmem:[%s1 + $0x120] sm:$0xff]
    %v66 = vld [vmem:[%s1 + $0x128] sm:$0xff]
    %v67 = vld [vmem:[%s1 + $0x130] sm:$0xff]
    %v68 = vld [vmem:[%s1 + $0x138] sm:$0xff]
    %v69 = vld [vmem:[%s1 + $0x140] sm:$0xff]
    %v70 = vld [vmem:[%s1 + $0x148] sm:$0xff]
    %v71 = vld [vmem:[%s1 + $0x150] sm:$0xff]
    %v72 = vld [vmem:[%s1 + $0x158] sm:$0xff]
    %v73 = vld [vmem:[%s1 + $0x160] sm:$0xff]
    %v74 = vld [vmem:[%s1 + $0x168] sm:$0xff]
    %v75 = vld [vmem:[%s1 + $0x170] sm:$0xff]
    %v76 = vld [vmem:[%s1 + $0x178] sm:$0xff]
    %v77 = vld [vmem:[%s1 + $0x180] sm:$0xff]
    %v78 = vld [vmem:[%s1 + $0x188] sm:$0xff]
    %v79 = vld [vmem:[%s1 + $0x190] sm:$0xff]
    %v80 = vld [vmem:[%s1 + $0x198] sm:$0xff]
    %v81 = vld [vmem:[%s1 + $0x1a0] sm:$0xff]
    %v82 = vld [vmem:[%s1 + $0x1a8] sm:$0xff]
    %v83 = vld [vmem:[%s1 + $0x1b0] sm:$0xff]
    %v84 = vld [vmem:[%s1 + $0x1b8] sm:$0xff]
    %v85 = vld [vmem:[%s1 + $0x1c0] sm:$0xff]
    %v86 = vld [vmem:[%s1 + $0x1c8] sm:$0xff]
    %v87 = vld [vmem:[%s1 + $0x1d0] sm:$0xff]
    %v88 = vld [vmem:[%s1 + $0x1d8] sm:$0xff]
    %v89 = vld [vmem:[%s1 + $0x1e0] sm:$0xff]
    %v90 = vld [vmem:[%s1 + $0x1e8] sm:$0xff]
    %v91 = vld [vmem:[%s1 + $0x1f0] sm:$0xff]
    %v92 = vld [vmem:[%s1 + $0x1f8] sm:$0xff]
    %v93 = vld [vmem:[%s1 + $0x200] sm:$0xff]
    %v94 = vld [vmem:[%s1 + $0x208] sm:$0xff]
    %v95 = vld [vmem:[%s1 + $0x210] sm:$0xff]
    %v96 = vld [vmem:[%s1 + $0x218] sm:$0xff]
    %v97 = vld [vmem:[%s1 + $0x220] sm:$0xff]
    %v98 = vld [vmem:[%s1 + $0x228] sm:$0xff]
    %v99 = vld [vmem:[%s1 + $0x230] sm:$0xff]
    %v100 = vld [vmem:[%s1 + $0x238] sm:$0xff]
    %v101 = vld [vmem:[%s1 + $0x240] sm:$0xff]
    %v102 = vld [vmem:[%s1 + $0x248] sm:$0xff]
    %v103 = vld [vmem:[%s1 + $0x250] sm:$0xff]
    %v104 = vld [vmem:[%s1 + $0x258] sm:$0xff]
    %v105 = vld [vmem:[%s1 + $0x260] sm:$0xff]
    %v106 = vld [vmem:[%s1 + $0x268] sm:$0xff]
    %v107 = vld [vmem:[%s1 + $0x270] sm:$0xff]
    %v108 = vld [vmem:[%s1 + $0x278] sm:$0xff]
    %v109 = vld [vmem:[%s1 + $0x280] sm:$0xff]
    %v110 = vld [vmem:[%s1 + $0x288] sm:$0xff]
    %v111 = vld [vmem:[%s1 + $0x290] sm:$0xff]
    %v112 = vld [vmem:[%s1 + $0x298] sm:$0xff]
    %v113 = vld [vmem:[%s1 + $0x2a0] sm:$0xff]
    %v114 = vld [vmem:[%s1 + $0x2a8] sm:$0xff]
    %v115 = vld [vmem:[%s1 + $0x2b0] sm:$0xff]
    %v116 = vld [vmem:[%s1 + $0x2b8] sm:$0xff]
    %v117 = vld [vmem:[%s1 + $0x2c0] sm:$0xff]
    %v118 = vld [vmem:[%s1 + $0x2c8] sm:$0xff]
    %v119 = vld [vmem:[%s1 + $0x2d0] sm:$0xff]
    %v120 = vld [vmem:[%s1 + $0x2d8] sm:$0xff]
    %v121 = vld [vmem:[%s1 + $0x2e0] sm:$0xff]
    %v122 = vld [vmem:[%s1 + $0x2e8] sm:$0xff]
    %v123 = vld [vmem:[%s1 + $0x2f0] sm:$0xff]
    %v124 = vld [vmem:[%s1 + $0x2f8] sm:$0xff]
    %v125 = vld [vmem:[%s1 + $0x300] sm:$0xff]
    %v126 = vld [vmem:[%s1 + $0x308] sm:$0xff]
    %v127 = vld [vmem:[%s1 + $0x310] sm:$0xff]
    %v128 = vld [vmem:[%s1 + $0x318] sm:$0xff]
    %v129 = vld [vmem:[%s1 + $0x320] sm:$0xff]
    %v130 = vld [vmem:[%s1 + $0x328] sm:$0xff]
    %v131 = vld [vmem:[%s1 + $0x330] sm:$0xff]
    %v132 = vld [vmem:[%s1 + $0x338] sm:$0xff]
    %v133 = vld [vmem:[%s1 + $0x340] sm:$0xff]
    %v134 = vld [vmem:[%s1 + $0x348] sm:$0xff]
    %v135 = vld [vmem:[%s1 + $0x350] sm:$0xff]
    %v136 = vld [vmem:[%s1 + $0x358] sm:$0xff]
    %v137 = vld [vmem:[%s1 + $0x360] sm:$0xff]
    %v138 = vld [vmem:[%s1 + $0x368] sm:$0xff]
    %v139 = vld [vmem:[%s1 + $0x370] sm:$0xff]
    %v140 = vld [vmem:[%s1 + $0x378] sm:$0xff]
    %v141 = vld [vmem:[%s1 + $0x380] sm:$0xff]
    %v142 = vld [vmem:[%s1 + $0x388] sm:$0xff]
    %v143 = vld [vmem:[%s1 + $0x390] sm:$0xff]
    %v144 = vld [vmem:[%s1 + $0x398] sm:$0xff]
    %v145 = vld [vmem:[%s1 + $0x3a0] sm:$0xff]
    %v146 = vld [vmem:[%s1 + $0x3a8] sm:$0x7f]
    %v147 = vld [vmem:[%s2] sm:$0x1]
    %v149 = vlaneseq
    %v150 = vshrl.u32 %v149, 7
    %v151 = vsub.s32 0, %v150
    %v152 = vrot.slane %v147, %v151
    %vm154 = vcmask 384000
    %v156 = vsel %vm154, %v28, 0
    %vm158 = vcmask 1046528
    %v160 = vsel %vm158, %v146, 0
    %162 = vmatprep.subr.mxu0 0.0
    %163 = vmatpush1.msra.mxu0 %v44
    %164 = vmatprep.subr.mxu0 0.0
    %165 = vmatpush1.msra.mxu0 %v43
    %166 = vmatprep.subr.mxu0 0.0
    %167 = vmatpush1.msra.mxu0 %v42
    %168 = vmatprep.subr.mxu0 0.0
    %169 = vmatpush1.msra.mxu0 %v41
    %170 = vmatprep.subr.mxu0 0.0
    %171 = vmatpush1.msra.mxu0 %v40
    %172 = vmatprep.subr.mxu0 0.0
    %173 = vmatpush1.msra.mxu0 %v39
    %174 = vmatprep.subr.mxu0 0.0
    %175 = vmatpush1.msra.mxu0 %v38
    %176 = vmatprep.subr.mxu0 0.0
    %177 = vmatpush1.msra.mxu0 %v37
    %178 = vmatprep.subr.mxu0 0.0
    %179 = vmatpush1.msra.mxu0 %v36
    %180 = vmatprep.subr.mxu0 0.0
    %181 = vmatpush1.msra.mxu0 %v35
    %182 = vmatprep.subr.mxu0 0.0
    %183 = vmatpush1.msra.mxu0 %v34
    %184 = vmatprep.subr.mxu0 0.0
    %185 = vmatpush1.msra.mxu0 %v33
    %186 = vmatprep.subr.mxu0 0.0
    %187 = vmatpush1.msra.mxu0 %v32
    %188 = vmatprep.subr.mxu0 0.0
    %189 = vmatpush1.msra.mxu0 %v31
    %190 = vmatprep.subr.mxu0 0.0
    %191 = vmatpush1.msra.mxu0 %v30
    %192 = vmatprep.subr.mxu0 0.0
    %193 = vmatpush1.msra.mxu0 %v29
    %194 = vmatprep.subr.mxu0 0.0
    %195 = vmatpush2.msra.mxu0 %v60
    %196 = vmatprep.subr.mxu0 0.0
    %197 = vmatpush2.msra.mxu0 %v59
    %198 = vmatprep.subr.mxu0 0.0
    %199 = vmatpush2.msra.mxu0 %v58
    %200 = vmatprep.subr.mxu0 0.0
    %201 = vmatpush2.msra.mxu0 %v57
    %202 = vmatprep.subr.mxu0 0.0
    %203 = vmatpush2.msra.mxu0 %v56
    %204 = vmatprep.subr.mxu0 0.0
    %205 = vmatpush2.msra.mxu0 %v55
    %206 = vmatprep.subr.mxu0 0.0
    %207 = vmatpush2.msra.mxu0 %v54
    %208 = vmatprep.subr.mxu0 0.0
    %209 = vmatpush2.msra.mxu0 %v53
    %210 = vmatprep.subr.mxu0 0.0
    %211 = vmatpush2.msra.mxu0 %v52
    %212 = vmatprep.subr.mxu0 0.0
    %213 = vmatpush2.msra.mxu0 %v51
    %214 = vmatprep.subr.mxu0 0.0
    %215 = vmatpush2.msra.mxu0 %v50
    %216 = vmatprep.subr.mxu0 0.0
    %217 = vmatpush2.msra.mxu0 %v49
    %218 = vmatprep.subr.mxu0 0.0
    %219 = vmatpush2.msra.mxu0 %v48
    %220 = vmatprep.subr.mxu0 0.0
    %221 = vmatpush2.msra.mxu0 %v47
    %222 = vmatprep.subr.mxu0 0.0
    %223 = vmatpush2.msra.mxu0 %v46
    %224 = vmatprep.subr.mxu0 0.0
    %225 = vmatpush2.msra.mxu0 %v45
    %226 = vmatprep.mubr.f32.mxu0 %v22
    %227 = vmatmul.mubr.f32.gmra.mxu0 %v21
    %v228 = vpop.f32.mrf.mxu0
    %v229 = vadd.f32 %v152, %v228
    %v230 = vpop.f32.mrf.mxu0
    %231 = vdwg.mxu0
    %232 = vmatprep.subr.mxu0 0.0
    %233 = vmatpush1.msra.mxu0 %v76
    %234 = vmatprep.subr.mxu0 0.0
    %235 = vmatpush1.msra.mxu0 %v75
    %236 = vmatprep.subr.mxu0 0.0
    %237 = vmatpush1.msra.mxu0 %v74
    %238 = vmatprep.subr.mxu0 0.0
    %239 = vmatpush1.msra.mxu0 %v73
    %240 = vmatprep.subr.mxu0 0.0
    %241 = vmatpush1.msra.mxu0 %v72
    %242 = vmatprep.subr.mxu0 0.0
    %243 = vmatpush1.msra.mxu0 %v71
    %244 = vmatprep.subr.mxu0 0.0
    %245 = vmatpush1.msra.mxu0 %v70
    %246 = vmatprep.subr.mxu0 0.0
    %247 = vmatpush1.msra.mxu0 %v69
    %248 = vmatprep.subr.mxu0 0.0
    %249 = vmatpush1.msra.mxu0 %v68
    %250 = vmatprep.subr.mxu0 0.0
    %251 = vmatpush1.msra.mxu0 %v67
    %252 = vmatprep.subr.mxu0 0.0
    %253 = vmatpush1.msra.mxu0 %v66
    %254 = vmatprep.subr.mxu0 0.0
    %255 = vmatpush1.msra.mxu0 %v65
    %256 = vmatprep.subr.mxu0 0.0
    %257 = vmatpush1.msra.mxu0 %v64
    %258 = vmatprep.subr.mxu0 0.0
    %259 = vmatpush1.msra.mxu0 %v63
    %260 = vmatprep.subr.mxu0 0.0
    %261 = vmatpush1.msra.mxu0 %v62
    %262 = vmatprep.subr.mxu0 0.0
    %263 = vmatpush1.msra.mxu0 %v61
    %264 = vmatprep.subr.mxu0 0.0
    %265 = vmatpush2.msra.mxu0 %v92
    %266 = vmatprep.subr.mxu0 0.0
    %267 = vmatpush2.msra.mxu0 %v91
    %268 = vmatprep.subr.mxu0 0.0
    %269 = vmatpush2.msra.mxu0 %v90
    %270 = vmatprep.subr.mxu0 0.0
    %271 = vmatpush2.msra.mxu0 %v89
    %272 = vmatprep.subr.mxu0 0.0
    %273 = vmatpush2.msra.mxu0 %v88
    %274 = vmatprep.subr.mxu0 0.0
    %275 = vmatpush2.msra.mxu0 %v87
    %276 = vmatprep.subr.mxu0 0.0
    %277 = vmatpush2.msra.mxu0 %v86
    %278 = vmatprep.subr.mxu0 0.0
    %279 = vmatpush2.msra.mxu0 %v85
    %280 = vmatprep.subr.mxu0 0.0
    %281 = vmatpush2.msra.mxu0 %v84
    %282 = vmatprep.subr.mxu0 0.0
    %283 = vmatpush2.msra.mxu0 %v83
    %284 = vmatprep.subr.mxu0 0.0
    %285 = vmatpush2.msra.mxu0 %v82
    %286 = vmatprep.subr.mxu0 0.0
    %287 = vmatpush2.msra.mxu0 %v81
    %288 = vmatprep.subr.mxu0 0.0
    %289 = vmatpush2.msra.mxu0 %v80
    %290 = vmatprep.subr.mxu0 0.0
    %291 = vmatpush2.msra.mxu0 %v79
    %292 = vmatprep.subr.mxu0 0.0
    %293 = vmatpush2.msra.mxu0 %v78
    %294 = vmatprep.subr.mxu0 0.0
    %295 = vmatpush2.msra.mxu0 %v77
    %296 = vmatprep.mubr.f32.mxu0 %v24
    %297 = vmatmul.mubr.f32.gmra.mxu0 %v23
    %v298 = vpop.f32.mrf.mxu0
    %v299 = vadd.f32 %v229, %v298
    %v300 = vpop.f32.mrf.mxu0
    %301 = vdwg.mxu0
    %302 = vmatprep.subr.mxu0 0.0
    %303 = vmatpush1.msra.mxu0 %v108
    %304 = vmatprep.subr.mxu0 0.0
    %305 = vmatpush1.msra.mxu0 %v107
    %306 = vmatprep.subr.mxu0 0.0
    %307 = vmatpush1.msra.mxu0 %v106
    %308 = vmatprep.subr.mxu0 0.0
    %309 = vmatpush1.msra.mxu0 %v105
    %310 = vmatprep.subr.mxu0 0.0
    %311 = vmatpush1.msra.mxu0 %v104
    %312 = vmatprep.subr.mxu0 0.0
    %313 = vmatpush1.msra.mxu0 %v103
    %314 = vmatprep.subr.mxu0 0.0
    %315 = vmatpush1.msra.mxu0 %v102
    %316 = vmatprep.subr.mxu0 0.0
    %317 = vmatpush1.msra.mxu0 %v101
    %318 = vmatprep.subr.mxu0 0.0
    %319 = vmatpush1.msra.mxu0 %v100
    %320 = vmatprep.subr.mxu0 0.0
    %321 = vmatpush1.msra.mxu0 %v99
    %322 = vmatprep.subr.mxu0 0.0
    %323 = vmatpush1.msra.mxu0 %v98
    %324 = vmatprep.subr.mxu0 0.0
    %325 = vmatpush1.msra.mxu0 %v97
    %326 = vmatprep.subr.mxu0 0.0
    %327 = vmatpush1.msra.mxu0 %v96
    %328 = vmatprep.subr.mxu0 0.0
    %329 = vmatpush1.msra.mxu0 %v95
    %330 = vmatprep.subr.mxu0 0.0
    %331 = vmatpush1.msra.mxu0 %v94
    %332 = vmatprep.subr.mxu0 0.0
    %333 = vmatpush1.msra.mxu0 %v93
    %334 = vmatprep.subr.mxu0 0.0
    %335 = vmatpush2.msra.mxu0 %v124
    %336 = vmatprep.subr.mxu0 0.0
    %337 = vmatpush2.msra.mxu0 %v123
    %338 = vmatprep.subr.mxu0 0.0
    %339 = vmatpush2.msra.mxu0 %v122
    %340 = vmatprep.subr.mxu0 0.0
    %341 = vmatpush2.msra.mxu0 %v121
    %342 = vmatprep.subr.mxu0 0.0
    %343 = vmatpush2.msra.mxu0 %v120
    %344 = vmatprep.subr.mxu0 0.0
    %345 = vmatpush2.msra.mxu0 %v119
    %346 = vmatprep.subr.mxu0 0.0
    %347 = vmatpush2.msra.mxu0 %v118
    %348 = vmatprep.subr.mxu0 0.0
    %349 = vmatpush2.msra.mxu0 %v117
    %350 = vmatprep.subr.mxu0 0.0
    %351 = vmatpush2.msra.mxu0 %v116
    %352 = vmatprep.subr.mxu0 0.0
    %353 = vmatpush2.msra.mxu0 %v115
    %354 = vmatprep.subr.mxu0 0.0
    %355 = vmatpush2.msra.mxu0 %v114
    %356 = vmatprep.subr.mxu0 0.0
    %357 = vmatpush2.msra.mxu0 %v113
    %358 = vmatprep.subr.mxu0 0.0
    %359 = vmatpush2.msra.mxu0 %v112
    %360 = vmatprep.subr.mxu0 0.0
    %361 = vmatpush2.msra.mxu0 %v111
    %362 = vmatprep.subr.mxu0 0.0
    %363 = vmatpush2.msra.mxu0 %v110
    %364 = vmatprep.subr.mxu0 0.0
    %365 = vmatpush2.msra.mxu0 %v109
    %366 = vmatprep.mubr.f32.mxu0 %v26
    %367 = vmatmul.mubr.f32.gmra.mxu0 %v25
    %v368 = vpop.f32.mrf.mxu0
    %v369 = vadd.f32 %v299, %v368
    %v370 = vpop.f32.mrf.mxu0
    %371 = vdwg.mxu0
    %372 = vmatprep.subr.mxu0 0.0
    %373 = vmatpush1.msra.mxu0 %v140
    %374 = vmatprep.subr.mxu0 0.0
    %375 = vmatpush1.msra.mxu0 %v139
    %376 = vmatprep.subr.mxu0 0.0
    %377 = vmatpush1.msra.mxu0 %v138
    %378 = vmatprep.subr.mxu0 0.0
    %379 = vmatpush1.msra.mxu0 %v137
    %380 = vmatprep.subr.mxu0 0.0
    %381 = vmatpush1.msra.mxu0 %v136
    %382 = vmatprep.subr.mxu0 0.0
    %383 = vmatpush1.msra.mxu0 %v135
    %384 = vmatprep.subr.mxu0 0.0
    %385 = vmatpush1.msra.mxu0 %v134
    %386 = vmatprep.subr.mxu0 0.0
    %387 = vmatpush1.msra.mxu0 %v133
    %388 = vmatprep.subr.mxu0 0.0
    %389 = vmatpush1.msra.mxu0 %v132
    %390 = vmatprep.subr.mxu0 0.0
    %391 = vmatpush1.msra.mxu0 %v131
    %392 = vmatprep.subr.mxu0 0.0
    %393 = vmatpush1.msra.mxu0 %v130
    %394 = vmatprep.subr.mxu0 0.0
    %395 = vmatpush1.msra.mxu0 %v129
    %396 = vmatprep.subr.mxu0 0.0
    %397 = vmatpush1.msra.mxu0 %v128
    %398 = vmatprep.subr.mxu0 0.0
    %399 = vmatpush1.msra.mxu0 %v127
    %400 = vmatprep.subr.mxu0 0.0
    %401 = vmatpush1.msra.mxu0 %v126
    %402 = vmatprep.subr.mxu0 0.0
    %403 = vmatpush1.msra.mxu0 %v125
    %404 = vmatprep.subr.mxu0 0.0
    %405 = vmatpush2.msra.mxu0 0.0
    %406 = vmatprep.subr.mxu0 0.0
    %407 = vmatpush2.msra.mxu0 0.0
    %408 = vmatprep.subr.mxu0 0.0
    %409 = vmatpush2.msra.mxu0 0.0
    %410 = vmatprep.subr.mxu0 0.0
    %411 = vmatpush2.msra.mxu0 0.0
    %412 = vmatprep.subr.mxu0 0.0
    %413 = vmatpush2.msra.mxu0 0.0
    %414 = vmatprep.subr.mxu0 0.0
    %415 = vmatpush2.msra.mxu0 0.0
    %416 = vmatprep.subr.mxu0 0.0
    %417 = vmatpush2.msra.mxu0 0.0
    %418 = vmatprep.subr.mxu0 0.0
    %419 = vmatpush2.msra.mxu0 0.0
    %420 = vmatprep.subr.mxu0 0.0
    %421 = vmatpush2.msra.mxu0 0.0
    %422 = vmatprep.subr.mxu0 0.0
    %423 = vmatpush2.msra.mxu0 0.0
    %424 = vmatprep.subr.mxu0 0.0
    %425 = vmatpush2.msra.mxu0 %v160
    %426 = vmatprep.subr.mxu0 0.0
    %427 = vmatpush2.msra.mxu0 %v145
    %428 = vmatprep.subr.mxu0 0.0
    %429 = vmatpush2.msra.mxu0 %v144
    %430 = vmatprep.subr.mxu0 0.0
    %431 = vmatpush2.msra.mxu0 %v143
    %432 = vmatprep.subr.mxu0 0.0
    %433 = vmatpush2.msra.mxu0 %v142
    %434 = vmatprep.subr.mxu0 0.0
    %435 = vmatpush2.msra.mxu0 %v141
    %436 = vmatprep.mubr.f32.mxu0 %v156
    %437 = vmatmul.mubr.f32.gmra.mxu0 %v27
    %v438 = vpop.f32.mrf.mxu0
    %v439 = vadd.f32 %v369, %v438
    %v440 = vpop.f32.mrf.mxu0
    %441 = vdwg.mxu0
    %v442 = vtanh.pop %v439
    %v443 = vld [vmem:[%s3] sm:$0xff]
    %v444 = vld [vmem:[%s3 + $0x8] sm:$0xff]
    %v445 = vld [vmem:[%s3 + $0x10] sm:$0xff]
    %v446 = vld [vmem:[%s3 + $0x18] sm:$0xff]
    %v447 = vld [vmem:[%s3 + $0x20] sm:$0xff]
    %v448 = vld [vmem:[%s3 + $0x28] sm:$0xff]
    %v449 = vld [vmem:[%s3 + $0x30] sm:$0xff]
    %v450 = vld [vmem:[%s3 + $0x38] sm:$0xff]
    %v451 = vld [vmem:[%s3 + $0x40] sm:$0xff]
    %v452 = vld [vmem:[%s3 + $0x48] sm:$0xff]
    %v453 = vld [vmem:[%s3 + $0x50] sm:$0xff]
    %v454 = vld [vmem:[%s3 + $0x58] sm:$0xff]
    %v455 = vld [vmem:[%s3 + $0x60] sm:$0xff]
    %v456 = vld [vmem:[%s3 + $0x68] sm:$0xff]
    %v457 = vld [vmem:[%s3 + $0x70] sm:$0xff]
    %v458 = vld [vmem:[%s3 + $0x78] sm:$0xff]
    %v459 = vld [vmem:[%s3 + $0x80] sm:$0xff]
    %v460 = vld [vmem:[%s3 + $0x88] sm:$0xff]
    %v461 = vld [vmem:[%s3 + $0x90] sm:$0xff]
    %v462 = vld [vmem:[%s3 + $0x98] sm:$0xff]
    %v463 = vld [vmem:[%s3 + $0xa0] sm:$0xff]
    %v464 = vld [vmem:[%s3 + $0xa8] sm:$0xff]
    %v465 = vld [vmem:[%s3 + $0xb0] sm:$0xff]
    %v466 = vld [vmem:[%s3 + $0xb8] sm:$0xff]
    %v467 = vld [vmem:[%s3 + $0xc0] sm:$0xff]
    %v468 = vld [vmem:[%s3 + $0xc8] sm:$0xff]
    %v469 = vld [vmem:[%s3 + $0xd0] sm:$0xff]
    %v470 = vld [vmem:[%s3 + $0xd8] sm:$0xff]
    %v471 = vld [vmem:[%s3 + $0xe0] sm:$0xff]
    %v472 = vld [vmem:[%s3 + $0xe8] sm:$0xff]
    %v473 = vld [vmem:[%s3 + $0xf0] sm:$0xff]
    %v474 = vld [vmem:[%s3 + $0xf8] sm:$0xff]
    %v475 = vld [vmem:[%s3 + $0x100] sm:$0xff]
    %v476 = vld [vmem:[%s3 + $0x108] sm:$0xff]
    %v477 = vld [vmem:[%s3 + $0x110] sm:$0xff]
    %v478 = vld [vmem:[%s3 + $0x118] sm:$0xff]
    %v479 = vld [vmem:[%s3 + $0x120] sm:$0xff]
    %v480 = vld [vmem:[%s3 + $0x128] sm:$0xff]
    %v481 = vld [vmem:[%s3 + $0x130] sm:$0x3]
    %v482 = vld [vmem:[%s3 + $0x138] sm:$0x3]
    %v483 = vld [vmem:[%s3 + $0x140] sm:$0x3]
    %v484 = vld [vmem:[%s3 + $0x148] sm:$0x3]
    %v485 = vld [vmem:[%s3 + $0x150] sm:$0x3]
    %v486 = vld [vmem:[%s3 + $0x158] sm:$0x3]
    %v487 = vld [vmem:[%s3 + $0x160] sm:$0x3]
    %v488 = vld [vmem:[%s3 + $0x168] sm:$0x3]
    %v489 = vld [vmem:[%s3 + $0x170] sm:$0x3]
    %v490 = vld [vmem:[%s3 + $0x178] sm:$0x3]
    %v491 = vld [vmem:[%s3 + $0x180] sm:$0x3]
    %v492 = vld [vmem:[%s3 + $0x188] sm:$0x3]
    %v493 = vld [vmem:[%s3 + $0x190] sm:$0x3]
    %v494 = vld [vmem:[%s3 + $0x198] sm:$0x3]
    %v495 = vld [vmem:[%s3 + $0x1a0] sm:$0x3]
    %v496 = vld [vmem:[%s3 + $0x1a8] sm:$0x3]
    %v497 = vld [vmem:[%s3 + $0x1b0] sm:$0x3]
    %v498 = vld [vmem:[%s3 + $0x1b8] sm:$0x3]
    %v499 = vld [vmem:[%s3 + $0x1c0] sm:$0x3]
    %v500 = vld [vmem:[%s3 + $0x1c8] sm:$0x3]
    %v501 = vld [vmem:[%s3 + $0x1d0] sm:$0x3]
    %v502 = vld [vmem:[%s3 + $0x1d8] sm:$0x3]
    %v503 = vld [vmem:[%s3 + $0x1e0] sm:$0x3]
    %v504 = vld [vmem:[%s3 + $0x1e8] sm:$0x3]
    %v505 = vld [vmem:[%s3 + $0x1f0] sm:$0x3]
    %v506 = vld [vmem:[%s3 + $0x1f8] sm:$0x3]
    %v507 = vld [vmem:[%s3 + $0x200] sm:$0x3]
    %v508 = vld [vmem:[%s3 + $0x208] sm:$0x3]
    %v509 = vld [vmem:[%s3 + $0x210] sm:$0x3]
    %v510 = vld [vmem:[%s3 + $0x218] sm:$0x3]
    %v511 = vld [vmem:[%s3 + $0x220] sm:$0x3]
    %v512 = vld [vmem:[%s3 + $0x228] sm:$0x3]
    %v513 = vld [vmem:[%s3 + $0x230] sm:$0x3]
    %v514 = vld [vmem:[%s3 + $0x238] sm:$0x3]
    %v515 = vld [vmem:[%s3 + $0x240] sm:$0x3]
    %v516 = vld [vmem:[%s3 + $0x248] sm:$0x3]
    %v517 = vld [vmem:[%s3 + $0x250] sm:$0x3]
    %v518 = vld [vmem:[%s3 + $0x258] sm:$0x3]
    %v519 = vld [vmem:[%s4] sm:$0xff]
    %v520 = vld [vmem:[%s4 + $0x8] sm:$0xff]
    %v521 = vld [vmem:[%s4 + $0x10] sm:$0xff]
    %v522 = vld [vmem:[%s4 + $0x18] sm:$0xff]
    %v523 = vld [vmem:[%s4 + $0x20] sm:$0x3f]
    %v529 = vlaneseq
    %v530 = vshrl.u32 %v529, 7
    %v531 = vsub.s32 0, %v530
    %v532 = vrot.slane %v519, %v531
    %v533 = vlaneseq
    %v534 = vshrl.u32 %v533, 7
    %v535 = vsub.s32 1, %v534
    %v536 = vrot.slane %v519, %v535
    %v537 = vlaneseq
    %v538 = vshrl.u32 %v537, 7
    %v539 = vsub.s32 2, %v538
    %v540 = vrot.slane %v519, %v539
    %v541 = vlaneseq
    %v542 = vshrl.u32 %v541, 7
    %v543 = vsub.s32 3, %v542
    %v544 = vrot.slane %v519, %v543
    %v545 = vlaneseq
    %v546 = vshrl.u32 %v545, 7
    %v547 = vsub.s32 4, %v546
    %v548 = vrot.slane %v519, %v547
    %v549 = vlaneseq
    %v550 = vshrl.u32 %v549, 7
    %v551 = vsub.s32 5, %v550
    %v552 = vrot.slane %v519, %v551
    %v553 = vlaneseq
    %v554 = vshrl.u32 %v553, 7
    %v555 = vsub.s32 6, %v554
    %v556 = vrot.slane %v519, %v555
    %v557 = vlaneseq
    %v558 = vshrl.u32 %v557, 7
    %v559 = vsub.s32 7, %v558
    %v560 = vrot.slane %v519, %v559
    %v561 = vlaneseq
    %v562 = vshrl.u32 %v561, 7
    %v563 = vsub.s32 0, %v562
    %v564 = vrot.slane %v520, %v563
    %v565 = vlaneseq
    %v566 = vshrl.u32 %v565, 7
    %v567 = vsub.s32 1, %v566
    %v568 = vrot.slane %v520, %v567
    %v569 = vlaneseq
    %v570 = vshrl.u32 %v569, 7
    %v571 = vsub.s32 2, %v570
    %v572 = vrot.slane %v520, %v571
    %v573 = vlaneseq
    %v574 = vshrl.u32 %v573, 7
    %v575 = vsub.s32 3, %v574
    %v576 = vrot.slane %v520, %v575
    %v577 = vlaneseq
    %v578 = vshrl.u32 %v577, 7
    %v579 = vsub.s32 4, %v578
    %v580 = vrot.slane %v520, %v579
    %v581 = vlaneseq
    %v582 = vshrl.u32 %v581, 7
    %v583 = vsub.s32 5, %v582
    %v584 = vrot.slane %v520, %v583
    %v585 = vlaneseq
    %v586 = vshrl.u32 %v585, 7
    %v587 = vsub.s32 6, %v586
    %v588 = vrot.slane %v520, %v587
    %v589 = vlaneseq
    %v590 = vshrl.u32 %v589, 7
    %v591 = vsub.s32 7, %v590
    %v592 = vrot.slane %v520, %v591
    %v593 = vlaneseq
    %v594 = vshrl.u32 %v593, 7
    %v595 = vsub.s32 0, %v594
    %v596 = vrot.slane %v521, %v595
    %v597 = vlaneseq
    %v598 = vshrl.u32 %v597, 7
    %v599 = vsub.s32 1, %v598
    %v600 = vrot.slane %v521, %v599
    %v601 = vlaneseq
    %v602 = vshrl.u32 %v601, 7
    %v603 = vsub.s32 2, %v602
    %v604 = vrot.slane %v521, %v603
    %v605 = vlaneseq
    %v606 = vshrl.u32 %v605, 7
    %v607 = vsub.s32 3, %v606
    %v608 = vrot.slane %v521, %v607
    %v609 = vlaneseq
    %v610 = vshrl.u32 %v609, 7
    %v611 = vsub.s32 4, %v610
    %v612 = vrot.slane %v521, %v611
    %v613 = vlaneseq
    %v614 = vshrl.u32 %v613, 7
    %v615 = vsub.s32 5, %v614
    %v616 = vrot.slane %v521, %v615
    %v617 = vlaneseq
    %v618 = vshrl.u32 %v617, 7
    %v619 = vsub.s32 6, %v618
    %v620 = vrot.slane %v521, %v619
    %v621 = vlaneseq
    %v622 = vshrl.u32 %v621, 7
    %v623 = vsub.s32 7, %v622
    %v624 = vrot.slane %v521, %v623
    %v625 = vlaneseq
    %v626 = vshrl.u32 %v625, 7
    %v627 = vsub.s32 0, %v626
    %v628 = vrot.slane %v522, %v627
    %v629 = vlaneseq
    %v630 = vshrl.u32 %v629, 7
    %v631 = vsub.s32 1, %v630
    %v632 = vrot.slane %v522, %v631
    %v633 = vlaneseq
    %v634 = vshrl.u32 %v633, 7
    %v635 = vsub.s32 2, %v634
    %v636 = vrot.slane %v522, %v635
    %v637 = vlaneseq
    %v638 = vshrl.u32 %v637, 7
    %v639 = vsub.s32 3, %v638
    %v640 = vrot.slane %v522, %v639
    %v641 = vlaneseq
    %v642 = vshrl.u32 %v641, 7
    %v643 = vsub.s32 4, %v642
    %v644 = vrot.slane %v522, %v643
    %v645 = vlaneseq
    %v646 = vshrl.u32 %v645, 7
    %v647 = vsub.s32 5, %v646
    %v648 = vrot.slane %v522, %v647
    %v649 = vlaneseq
    %v650 = vshrl.u32 %v649, 7
    %v651 = vsub.s32 6, %v650
    %v652 = vrot.slane %v522, %v651
    %v653 = vlaneseq
    %v654 = vshrl.u32 %v653, 7
    %v655 = vsub.s32 7, %v654
    %v656 = vrot.slane %v522, %v655
    %v657 = vlaneseq
    %v658 = vshrl.u32 %v657, 7
    %v659 = vsub.s32 0, %v658
    %v660 = vrot.slane %v523, %v659
    %v661 = vlaneseq
    %v662 = vshrl.u32 %v661, 7
    %v663 = vsub.s32 1, %v662
    %v664 = vrot.slane %v523, %v663
    %v665 = vlaneseq
    %v666 = vshrl.u32 %v665, 7
    %v667 = vsub.s32 2, %v666
    %v668 = vrot.slane %v523, %v667
    %v669 = vlaneseq
    %v670 = vshrl.u32 %v669, 7
    %v671 = vsub.s32 3, %v670
    %v672 = vrot.slane %v523, %v671
    %v673 = vlaneseq
    %v674 = vshrl.u32 %v673, 7
    %v675 = vsub.s32 4, %v674
    %v676 = vrot.slane %v523, %v675
    %v677 = vlaneseq
    %v678 = vshrl.u32 %v677, 7
    %v679 = vsub.s32 5, %v678
    %v680 = vrot.slane %v523, %v679
    %vm719 = vcmask 80896
    %v721 = vsel %vm719, %v442, 0
    %vm723 = vcmask 1041408
    %v725 = vsel %vm723, %v481, 0
    %v728 = vsel %vm723, %v482, 0
    %v731 = vsel %vm723, %v483, 0
    %v734 = vsel %vm723, %v484, 0
    %v737 = vsel %vm723, %v485, 0
    %v740 = vsel %vm723, %v486, 0
    %v743 = vsel %vm723, %v487, 0
    %v746 = vsel %vm723, %v488, 0
    %v749 = vsel %vm723, %v489, 0
    %v752 = vsel %vm723, %v490, 0
    %v755 = vsel %vm723, %v491, 0
    %v758 = vsel %vm723, %v492, 0
    %v761 = vsel %vm723, %v493, 0
    %v764 = vsel %vm723, %v494, 0
    %v767 = vsel %vm723, %v495, 0
    %v770 = vsel %vm723, %v496, 0
    %v773 = vsel %vm723, %v497, 0
    %v776 = vsel %vm723, %v498, 0
    %v779 = vsel %vm723, %v499, 0
    %v782 = vsel %vm723, %v500, 0
    %v785 = vsel %vm723, %v501, 0
    %v788 = vsel %vm723, %v502, 0
    %v791 = vsel %vm723, %v503, 0
    %v794 = vsel %vm723, %v504, 0
    %v797 = vsel %vm723, %v505, 0
    %v800 = vsel %vm723, %v506, 0
    %v803 = vsel %vm723, %v507, 0
    %v806 = vsel %vm723, %v508, 0
    %v809 = vsel %vm723, %v509, 0
    %v812 = vsel %vm723, %v510, 0
    %v815 = vsel %vm723, %v511, 0
    %v818 = vsel %vm723, %v512, 0
    %v821 = vsel %vm723, %v513, 0
    %v824 = vsel %vm723, %v514, 0
    %v827 = vsel %vm723, %v515, 0
    %v830 = vsel %vm723, %v516, 0
    %v833 = vsel %vm723, %v517, 0
    %v836 = vsel %vm723, %v518, 0
    %838 = vmatprep.subr.mxu0 0.0
    %839 = vmatpush1.msra.mxu0 0.0
    %840 = vmatprep.subr.mxu0 0.0
    %841 = vmatpush1.msra.mxu0 0.0
    %842 = vmatprep.subr.mxu0 0.0
    %843 = vmatpush1.msra.mxu0 0.0
    %844 = vmatprep.subr.mxu0 0.0
    %845 = vmatpush1.msra.mxu0 0.0
    %846 = vmatprep.subr.mxu0 0.0
    %847 = vmatpush1.msra.mxu0 0.0
    %848 = vmatprep.subr.mxu0 0.0
    %849 = vmatpush1.msra.mxu0 0.0
    %850 = vmatprep.subr.mxu0 0.0
    %851 = vmatpush1.msra.mxu0 0.0
    %852 = vmatprep.subr.mxu0 0.0
    %853 = vmatpush1.msra.mxu0 0.0
    %854 = vmatprep.subr.mxu0 0.0
    %855 = vmatpush1.msra.mxu0 0.0
    %856 = vmatprep.subr.mxu0 0.0
    %857 = vmatpush1.msra.mxu0 0.0
    %858 = vmatprep.subr.mxu0 0.0
    %859 = vmatpush1.msra.mxu0 0.0
    %860 = vmatprep.subr.mxu0 0.0
    %861 = vmatpush1.msra.mxu0 0.0
    %862 = vmatprep.subr.mxu0 0.0
    %863 = vmatpush1.msra.mxu0 0.0
    %864 = vmatprep.subr.mxu0 0.0
    %865 = vmatpush1.msra.mxu0 0.0
    %866 = vmatprep.subr.mxu0 %v728
    %867 = vmatpush1.msra.mxu0 %v725
    %868 = vmatprep.subr.mxu0 %v444
    %869 = vmatpush1.msra.mxu0 %v443
    %870 = vmatprep.subr.mxu0 0.0
    %871 = vmatpush2.msra.mxu0 0.0
    %872 = vmatprep.subr.mxu0 0.0
    %873 = vmatpush2.msra.mxu0 0.0
    %874 = vmatprep.subr.mxu0 0.0
    %875 = vmatpush2.msra.mxu0 0.0
    %876 = vmatprep.subr.mxu0 0.0
    %877 = vmatpush2.msra.mxu0 0.0
    %878 = vmatprep.subr.mxu0 0.0
    %879 = vmatpush2.msra.mxu0 0.0
    %880 = vmatprep.subr.mxu0 0.0
    %881 = vmatpush2.msra.mxu0 0.0
    %882 = vmatprep.subr.mxu0 0.0
    %883 = vmatpush2.msra.mxu0 0.0
    %884 = vmatprep.subr.mxu0 0.0
    %885 = vmatpush2.msra.mxu0 0.0
    %886 = vmatprep.subr.mxu0 0.0
    %887 = vmatpush2.msra.mxu0 0.0
    %888 = vmatprep.subr.mxu0 0.0
    %889 = vmatpush2.msra.mxu0 0.0
    %890 = vmatprep.subr.mxu0 0.0
    %891 = vmatpush2.msra.mxu0 0.0
    %892 = vmatprep.subr.mxu0 0.0
    %893 = vmatpush2.msra.mxu0 0.0
    %894 = vmatprep.subr.mxu0 0.0
    %895 = vmatpush2.msra.mxu0 0.0
    %896 = vmatprep.subr.mxu0 0.0
    %897 = vmatpush2.msra.mxu0 0.0
    %898 = vmatprep.subr.mxu0 0.0
    %899 = vmatpush2.msra.mxu0 0.0
    %900 = vmatprep.subr.mxu0 0.0
    %901 = vmatpush2.msra.mxu0 0.0
    %902 = vmatprep.mubr.f32.mxu0 0.0
    %903 = vmatmul.mubr.f32.gmra.mxu0 %v721
    %v904 = vpop.f32.mrf.mxu0
    %v905 = vadd.f32 %v532, %v904
    %v906 = vpop.f32.mrf.mxu0
    %v907 = vadd.f32 %v536, %v906
    %908 = vdwg.mxu0
    %909 = vmatprep.subr.mxu0 0.0
    %910 = vmatpush1.msra.mxu0 0.0
    %911 = vmatprep.subr.mxu0 0.0
    %912 = vmatpush1.msra.mxu0 0.0
    %913 = vmatprep.subr.mxu0 0.0
    %914 = vmatpush1.msra.mxu0 0.0
    %915 = vmatprep.subr.mxu0 0.0
    %916 = vmatpush1.msra.mxu0 0.0
    %917 = vmatprep.subr.mxu0 0.0
    %918 = vmatpush1.msra.mxu0 0.0
    %919 = vmatprep.subr.mxu0 0.0
    %920 = vmatpush1.msra.mxu0 0.0
    %921 = vmatprep.subr.mxu0 0.0
    %922 = vmatpush1.msra.mxu0 0.0
    %923 = vmatprep.subr.mxu0 0.0
    %924 = vmatpush1.msra.mxu0 0.0
    %925 = vmatprep.subr.mxu0 0.0
    %926 = vmatpush1.msra.mxu0 0.0
    %927 = vmatprep.subr.mxu0 0.0
    %928 = vmatpush1.msra.mxu0 0.0
    %929 = vmatprep.subr.mxu0 0.0
    %930 = vmatpush1.msra.mxu0 0.0
    %931 = vmatprep.subr.mxu0 0.0
    %932 = vmatpush1.msra.mxu0 0.0
    %933 = vmatprep.subr.mxu0 0.0
    %934 = vmatpush1.msra.mxu0 0.0
    %935 = vmatprep.subr.mxu0 0.0
    %936 = vmatpush1.msra.mxu0 0.0
    %937 = vmatprep.subr.mxu0 %v734
    %938 = vmatpush1.msra.mxu0 %v731
    %939 = vmatprep.subr.mxu0 %v446
    %940 = vmatpush1.msra.mxu0 %v445
    %941 = vmatprep.subr.mxu0 0.0
    %942 = vmatpush2.msra.mxu0 0.0
    %943 = vmatprep.subr.mxu0 0.0
    %944 = vmatpush2.msra.mxu0 0.0
    %945 = vmatprep.subr.mxu0 0.0
    %946 = vmatpush2.msra.mxu0 0.0
    %947 = vmatprep.subr.mxu0 0.0
    %948 = vmatpush2.msra.mxu0 0.0
    %949 = vmatprep.subr.mxu0 0.0
    %950 = vmatpush2.msra.mxu0 0.0
    %951 = vmatprep.subr.mxu0 0.0
    %952 = vmatpush2.msra.mxu0 0.0
    %953 = vmatprep.subr.mxu0 0.0
    %954 = vmatpush2.msra.mxu0 0.0
    %955 = vmatprep.subr.mxu0 0.0
    %956 = vmatpush2.msra.mxu0 0.0
    %957 = vmatprep.subr.mxu0 0.0
    %958 = vmatpush2.msra.mxu0 0.0
    %959 = vmatprep.subr.mxu0 0.0
    %960 = vmatpush2.msra.mxu0 0.0
    %961 = vmatprep.subr.mxu0 0.0
    %962 = vmatpush2.msra.mxu0 0.0
    %963 = vmatprep.subr.mxu0 0.0
    %964 = vmatpush2.msra.mxu0 0.0
    %965 = vmatprep.subr.mxu0 0.0
    %966 = vmatpush2.msra.mxu0 0.0
    %967 = vmatprep.subr.mxu0 0.0
    %968 = vmatpush2.msra.mxu0 0.0
    %969 = vmatprep.subr.mxu0 0.0
    %970 = vmatpush2.msra.mxu0 0.0
    %971 = vmatprep.subr.mxu0 0.0
    %972 = vmatpush2.msra.mxu0 0.0
    %973 = vmatprep.mubr.f32.mxu0 0.0
    %974 = vmatmul.mubr.f32.gmra.mxu0 %v721
    %v975 = vpop.f32.mrf.mxu0
    %v976 = vadd.f32 %v540, %v975
    %v977 = vpop.f32.mrf.mxu0
    %v978 = vadd.f32 %v544, %v977
    %979 = vdwg.mxu0
    %980 = vmatprep.subr.mxu0 0.0
    %981 = vmatpush1.msra.mxu0 0.0
    %982 = vmatprep.subr.mxu0 0.0
    %983 = vmatpush1.msra.mxu0 0.0
    %984 = vmatprep.subr.mxu0 0.0
    %985 = vmatpush1.msra.mxu0 0.0
    %986 = vmatprep.subr.mxu0 0.0
    %987 = vmatpush1.msra.mxu0 0.0
    %988 = vmatprep.subr.mxu0 0.0
    %989 = vmatpush1.msra.mxu0 0.0
    %990 = vmatprep.subr.mxu0 0.0
    %991 = vmatpush1.msra.mxu0 0.0
    %992 = vmatprep.subr.mxu0 0.0
    %993 = vmatpush1.msra.mxu0 0.0
    %994 = vmatprep.subr.mxu0 0.0
    %995 = vmatpush1.msra.mxu0 0.0
    %996 = vmatprep.subr.mxu0 0.0
    %997 = vmatpush1.msra.mxu0 0.0
    %998 = vmatprep.subr.mxu0 0.0
    %999 = vmatpush1.msra.mxu0 0.0
    %1000 = vmatprep.subr.mxu0 0.0
    %1001 = vmatpush1.msra.mxu0 0.0
    %1002 = vmatprep.subr.mxu0 0.0
    %1003 = vmatpush1.msra.mxu0 0.0
    %1004 = vmatprep.subr.mxu0 0.0
    %1005 = vmatpush1.msra.mxu0 0.0
    %1006 = vmatprep.subr.mxu0 0.0
    %1007 = vmatpush1.msra.mxu0 0.0
    %1008 = vmatprep.subr.mxu0 %v740
    %1009 = vmatpush1.msra.mxu0 %v737
    %1010 = vmatprep.subr.mxu0 %v448
    %1011 = vmatpush1.msra.mxu0 %v447
    %1012 = vmatprep.subr.mxu0 0.0
    %1013 = vmatpush2.msra.mxu0 0.0
    %1014 = vmatprep.subr.mxu0 0.0
    %1015 = vmatpush2.msra.mxu0 0.0
    %1016 = vmatprep.subr.mxu0 0.0
    %1017 = vmatpush2.msra.mxu0 0.0
    %1018 = vmatprep.subr.mxu0 0.0
    %1019 = vmatpush2.msra.mxu0 0.0
    %1020 = vmatprep.subr.mxu0 0.0
    %1021 = vmatpush2.msra.mxu0 0.0
    %1022 = vmatprep.subr.mxu0 0.0
    %1023 = vmatpush2.msra.mxu0 0.0
    %1024 = vmatprep.subr.mxu0 0.0
    %1025 = vmatpush2.msra.mxu0 0.0
    %1026 = vmatprep.subr.mxu0 0.0
    %1027 = vmatpush2.msra.mxu0 0.0
    %1028 = vmatprep.subr.mxu0 0.0
    %1029 = vmatpush2.msra.mxu0 0.0
    %1030 = vmatprep.subr.mxu0 0.0
    %1031 = vmatpush2.msra.mxu0 0.0
    %1032 = vmatprep.subr.mxu0 0.0
    %1033 = vmatpush2.msra.mxu0 0.0
    %1034 = vmatprep.subr.mxu0 0.0
    %1035 = vmatpush2.msra.mxu0 0.0
    %1036 = vmatprep.subr.mxu0 0.0
    %1037 = vmatpush2.msra.mxu0 0.0
    %1038 = vmatprep.subr.mxu0 0.0
    %1039 = vmatpush2.msra.mxu0 0.0
    %1040 = vmatprep.subr.mxu0 0.0
    %1041 = vmatpush2.msra.mxu0 0.0
    %1042 = vmatprep.subr.mxu0 0.0
    %1043 = vmatpush2.msra.mxu0 0.0
    %1044 = vmatprep.mubr.f32.mxu0 0.0
    %1045 = vmatmul.mubr.f32.gmra.mxu0 %v721
    %v1046 = vpop.f32.mrf.mxu0
    %v1047 = vadd.f32 %v548, %v1046
    %v1048 = vpop.f32.mrf.mxu0
    %v1049 = vadd.f32 %v552, %v1048
    %1050 = vdwg.mxu0
    %1051 = vmatprep.subr.mxu0 0.0
    %1052 = vmatpush1.msra.mxu0 0.0
    %1053 = vmatprep.subr.mxu0 0.0
    %1054 = vmatpush1.msra.mxu0 0.0
    %1055 = vmatprep.subr.mxu0 0.0
    %1056 = vmatpush1.msra.mxu0 0.0
    %1057 = vmatprep.subr.mxu0 0.0
    %1058 = vmatpush1.msra.mxu0 0.0
    %1059 = vmatprep.subr.mxu0 0.0
    %1060 = vmatpush1.msra.mxu0 0.0
    %1061 = vmatprep.subr.mxu0 0.0
    %1062 = vmatpush1.msra.mxu0 0.0
    %1063 = vmatprep.subr.mxu0 0.0
    %1064 = vmatpush1.msra.mxu0 0.0
    %1065 = vmatprep.subr.mxu0 0.0
    %1066 = vmatpush1.msra.mxu0 0.0
    %1067 = vmatprep.subr.mxu0 0.0
    %1068 = vmatpush1.msra.mxu0 0.0
    %1069 = vmatprep.subr.mxu0 0.0
    %1070 = vmatpush1.msra.mxu0 0.0
    %1071 = vmatprep.subr.mxu0 0.0
    %1072 = vmatpush1.msra.mxu0 0.0
    %1073 = vmatprep.subr.mxu0 0.0
    %1074 = vmatpush1.msra.mxu0 0.0
    %1075 = vmatprep.subr.mxu0 0.0
    %1076 = vmatpush1.msra.mxu0 0.0
    %1077 = vmatprep.subr.mxu0 0.0
    %1078 = vmatpush1.msra.mxu0 0.0
    %1079 = vmatprep.subr.mxu0 %v746
    %1080 = vmatpush1.msra.mxu0 %v743
    %1081 = vmatprep.subr.mxu0 %v450
    %1082 = vmatpush1.msra.mxu0 %v449
    %1083 = vmatprep.subr.mxu0 0.0
    %1084 = vmatpush2.msra.mxu0 0.0
    %1085 = vmatprep.subr.mxu0 0.0
    %1086 = vmatpush2.msra.mxu0 0.0
    %1087 = vmatprep.subr.mxu0 0.0
    %1088 = vmatpush2.msra.mxu0 0.0
    %1089 = vmatprep.subr.mxu0 0.0
    %1090 = vmatpush2.msra.mxu0 0.0
    %1091 = vmatprep.subr.mxu0 0.0
    %1092 = vmatpush2.msra.mxu0 0.0
    %1093 = vmatprep.subr.mxu0 0.0
    %1094 = vmatpush2.msra.mxu0 0.0
    %1095 = vmatprep.subr.mxu0 0.0
    %1096 = vmatpush2.msra.mxu0 0.0
    %1097 = vmatprep.subr.mxu0 0.0
    %1098 = vmatpush2.msra.mxu0 0.0
    %1099 = vmatprep.subr.mxu0 0.0
    %1100 = vmatpush2.msra.mxu0 0.0
    %1101 = vmatprep.subr.mxu0 0.0
    %1102 = vmatpush2.msra.mxu0 0.0
    %1103 = vmatprep.subr.mxu0 0.0
    %1104 = vmatpush2.msra.mxu0 0.0
    %1105 = vmatprep.subr.mxu0 0.0
    %1106 = vmatpush2.msra.mxu0 0.0
    %1107 = vmatprep.subr.mxu0 0.0
    %1108 = vmatpush2.msra.mxu0 0.0
    %1109 = vmatprep.subr.mxu0 0.0
    %1110 = vmatpush2.msra.mxu0 0.0
    %1111 = vmatprep.subr.mxu0 0.0
    %1112 = vmatpush2.msra.mxu0 0.0
    %1113 = vmatprep.subr.mxu0 0.0
    %1114 = vmatpush2.msra.mxu0 0.0
    %1115 = vmatprep.mubr.f32.mxu0 0.0
    %1116 = vmatmul.mubr.f32.gmra.mxu0 %v721
    %v1117 = vpop.f32.mrf.mxu0
    %v1118 = vadd.f32 %v556, %v1117
    %v1119 = vpop.f32.mrf.mxu0
    %v1120 = vadd.f32 %v560, %v1119
    %1121 = vdwg.mxu0
    %1122 = vmatprep.subr.mxu0 0.0
    %1123 = vmatpush1.msra.mxu0 0.0
    %1124 = vmatprep.subr.mxu0 0.0
    %1125 = vmatpush1.msra.mxu0 0.0
    %1126 = vmatprep.subr.mxu0 0.0
    %1127 = vmatpush1.msra.mxu0 0.0
    %1128 = vmatprep.subr.mxu0 0.0
    %1129 = vmatpush1.msra.mxu0 0.0
    %1130 = vmatprep.subr.mxu0 0.0
    %1131 = vmatpush1.msra.mxu0 0.0
    %1132 = vmatprep.subr.mxu0 0.0
    %1133 = vmatpush1.msra.mxu0 0.0
    %1134 = vmatprep.subr.mxu0 0.0
    %1135 = vmatpush1.msra.mxu0 0.0
    %1136 = vmatprep.subr.mxu0 0.0
    %1137 = vmatpush1.msra.mxu0 0.0
    %1138 = vmatprep.subr.mxu0 0.0
    %1139 = vmatpush1.msra.mxu0 0.0
    %1140 = vmatprep.subr.mxu0 0.0
    %1141 = vmatpush1.msra.mxu0 0.0
    %1142 = vmatprep.subr.mxu0 0.0
    %1143 = vmatpush1.msra.mxu0 0.0
    %1144 = vmatprep.subr.mxu0 0.0
    %1145 = vmatpush1.msra.mxu0 0.0
    %1146 = vmatprep.subr.mxu0 0.0
    %1147 = vmatpush1.msra.mxu0 0.0
    %1148 = vmatprep.subr.mxu0 0.0
    %1149 = vmatpush1.msra.mxu0 0.0
    %1150 = vmatprep.subr.mxu0 %v752
    %1151 = vmatpush1.msra.mxu0 %v749
    %1152 = vmatprep.subr.mxu0 %v452
    %1153 = vmatpush1.msra.mxu0 %v451
    %1154 = vmatprep.subr.mxu0 0.0
    %1155 = vmatpush2.msra.mxu0 0.0
    %1156 = vmatprep.subr.mxu0 0.0
    %1157 = vmatpush2.msra.mxu0 0.0
    %1158 = vmatprep.subr.mxu0 0.0
    %1159 = vmatpush2.msra.mxu0 0.0
    %1160 = vmatprep.subr.mxu0 0.0
    %1161 = vmatpush2.msra.mxu0 0.0
    %1162 = vmatprep.subr.mxu0 0.0
    %1163 = vmatpush2.msra.mxu0 0.0
    %1164 = vmatprep.subr.mxu0 0.0
    %1165 = vmatpush2.msra.mxu0 0.0
    %1166 = vmatprep.subr.mxu0 0.0
    %1167 = vmatpush2.msra.mxu0 0.0
    %1168 = vmatprep.subr.mxu0 0.0
    %1169 = vmatpush2.msra.mxu0 0.0
    %1170 = vmatprep.subr.mxu0 0.0
    %1171 = vmatpush2.msra.mxu0 0.0
    %1172 = vmatprep.subr.mxu0 0.0
    %1173 = vmatpush2.msra.mxu0 0.0
    %1174 = vmatprep.subr.mxu0 0.0
    %1175 = vmatpush2.msra.mxu0 0.0
    %1176 = vmatprep.subr.mxu0 0.0
    %1177 = vmatpush2.msra.mxu0 0.0
    %1178 = vmatprep.subr.mxu0 0.0
    %1179 = vmatpush2.msra.mxu0 0.0
    %1180 = vmatprep.subr.mxu0 0.0
    %1181 = vmatpush2.msra.mxu0 0.0
    %1182 = vmatprep.subr.mxu0 0.0
    %1183 = vmatpush2.msra.mxu0 0.0
    %1184 = vmatprep.subr.mxu0 0.0
    %1185 = vmatpush2.msra.mxu0 0.0
    %1186 = vmatprep.mubr.f32.mxu0 0.0
    %1187 = vmatmul.mubr.f32.gmra.mxu0 %v721
    %v1188 = vpop.f32.mrf.mxu0
    %v1189 = vadd.f32 %v564, %v1188
    %v1190 = vpop.f32.mrf.mxu0
    %v1191 = vadd.f32 %v568, %v1190
    %1192 = vdwg.mxu0
    %1193 = vmatprep.subr.mxu0 0.0
    %1194 = vmatpush1.msra.mxu0 0.0
    %1195 = vmatprep.subr.mxu0 0.0
    %1196 = vmatpush1.msra.mxu0 0.0
    %1197 = vmatprep.subr.mxu0 0.0
    %1198 = vmatpush1.msra.mxu0 0.0
    %1199 = vmatprep.subr.mxu0 0.0
    %1200 = vmatpush1.msra.mxu0 0.0
    %1201 = vmatprep.subr.mxu0 0.0
    %1202 = vmatpush1.msra.mxu0 0.0
    %1203 = vmatprep.subr.mxu0 0.0
    %1204 = vmatpush1.msra.mxu0 0.0
    %1205 = vmatprep.subr.mxu0 0.0
    %1206 = vmatpush1.msra.mxu0 0.0
    %1207 = vmatprep.subr.mxu0 0.0
    %1208 = vmatpush1.msra.mxu0 0.0
    %1209 = vmatprep.subr.mxu0 0.0
    %1210 = vmatpush1.msra.mxu0 0.0
    %1211 = vmatprep.subr.mxu0 0.0
    %1212 = vmatpush1.msra.mxu0 0.0
    %1213 = vmatprep.subr.mxu0 0.0
    %1214 = vmatpush1.msra.mxu0 0.0
    %1215 = vmatprep.subr.mxu0 0.0
    %1216 = vmatpush1.msra.mxu0 0.0
    %1217 = vmatprep.subr.mxu0 0.0
    %1218 = vmatpush1.msra.mxu0 0.0
    %1219 = vmatprep.subr.mxu0 0.0
    %1220 = vmatpush1.msra.mxu0 0.0
    %1221 = vmatprep.subr.mxu0 %v758
    %1222 = vmatpush1.msra.mxu0 %v755
    %1223 = vmatprep.subr.mxu0 %v454
    %1224 = vmatpush1.msra.mxu0 %v453
    %1225 = vmatprep.subr.mxu0 0.0
    %1226 = vmatpush2.msra.mxu0 0.0
    %1227 = vmatprep.subr.mxu0 0.0
    %1228 = vmatpush2.msra.mxu0 0.0
    %1229 = vmatprep.subr.mxu0 0.0
    %1230 = vmatpush2.msra.mxu0 0.0
    %1231 = vmatprep.subr.mxu0 0.0
    %1232 = vmatpush2.msra.mxu0 0.0
    %1233 = vmatprep.subr.mxu0 0.0
    %1234 = vmatpush2.msra.mxu0 0.0
    %1235 = vmatprep.subr.mxu0 0.0
    %1236 = vmatpush2.msra.mxu0 0.0
    %1237 = vmatprep.subr.mxu0 0.0
    %1238 = vmatpush2.msra.mxu0 0.0
    %1239 = vmatprep.subr.mxu0 0.0
    %1240 = vmatpush2.msra.mxu0 0.0
    %1241 = vmatprep.subr.mxu0 0.0
    %1242 = vmatpush2.msra.mxu0 0.0
    %1243 = vmatprep.subr.mxu0 0.0
    %1244 = vmatpush2.msra.mxu0 0.0
    %1245 = vmatprep.subr.mxu0 0.0
    %1246 = vmatpush2.msra.mxu0 0.0
    %1247 = vmatprep.subr.mxu0 0.0
    %1248 = vmatpush2.msra.mxu0 0.0
    %1249 = vmatprep.subr.mxu0 0.0
    %1250 = vmatpush2.msra.mxu0 0.0
    %1251 = vmatprep.subr.mxu0 0.0
    %1252 = vmatpush2.msra.mxu0 0.0
    %1253 = vmatprep.subr.mxu0 0.0
    %1254 = vmatpush2.msra.mxu0 0.0
    %1255 = vmatprep.subr.mxu0 0.0
    %1256 = vmatpush2.msra.mxu0 0.0
    %1257 = vmatprep.mubr.f32.mxu0 0.0
    %1258 = vmatmul.mubr.f32.gmra.mxu0 %v721
    %v1259 = vpop.f32.mrf.mxu0
    %v1260 = vadd.f32 %v572, %v1259
    %v1261 = vpop.f32.mrf.mxu0
    %v1262 = vadd.f32 %v576, %v1261
    %1263 = vdwg.mxu0
    %1264 = vmatprep.subr.mxu0 0.0
    %1265 = vmatpush1.msra.mxu0 0.0
    %1266 = vmatprep.subr.mxu0 0.0
    %1267 = vmatpush1.msra.mxu0 0.0
    %1268 = vmatprep.subr.mxu0 0.0
    %1269 = vmatpush1.msra.mxu0 0.0
    %1270 = vmatprep.subr.mxu0 0.0
    %1271 = vmatpush1.msra.mxu0 0.0
    %1272 = vmatprep.subr.mxu0 0.0
    %1273 = vmatpush1.msra.mxu0 0.0
    %1274 = vmatprep.subr.mxu0 0.0
    %1275 = vmatpush1.msra.mxu0 0.0
    %1276 = vmatprep.subr.mxu0 0.0
    %1277 = vmatpush1.msra.mxu0 0.0
    %1278 = vmatprep.subr.mxu0 0.0
    %1279 = vmatpush1.msra.mxu0 0.0
    %1280 = vmatprep.subr.mxu0 0.0
    %1281 = vmatpush1.msra.mxu0 0.0
    %1282 = vmatprep.subr.mxu0 0.0
    %1283 = vmatpush1.msra.mxu0 0.0
    %1284 = vmatprep.subr.mxu0 0.0
    %1285 = vmatpush1.msra.mxu0 0.0
    %1286 = vmatprep.subr.mxu0 0.0
    %1287 = vmatpush1.msra.mxu0 0.0
    %1288 = vmatprep.subr.mxu0 0.0
    %1289 = vmatpush1.msra.mxu0 0.0
    %1290 = vmatprep.subr.mxu0 0.0
    %1291 = vmatpush1.msra.mxu0 0.0
    %1292 = vmatprep.subr.mxu0 %v764
    %1293 = vmatpush1.msra.mxu0 %v761
    %1294 = vmatprep.subr.mxu0 %v456
    %1295 = vmatpush1.msra.mxu0 %v455
    %1296 = vmatprep.subr.mxu0 0.0
    %1297 = vmatpush2.msra.mxu0 0.0
    %1298 = vmatprep.subr.mxu0 0.0
    %1299 = vmatpush2.msra.mxu0 0.0
    %1300 = vmatprep.subr.mxu0 0.0
    %1301 = vmatpush2.msra.mxu0 0.0
    %1302 = vmatprep.subr.mxu0 0.0
    %1303 = vmatpush2.msra.mxu0 0.0
    %1304 = vmatprep.subr.mxu0 0.0
    %1305 = vmatpush2.msra.mxu0 0.0
    %1306 = vmatprep.subr.mxu0 0.0
    %1307 = vmatpush2.msra.mxu0 0.0
    %1308 = vmatprep.subr.mxu0 0.0
    %1309 = vmatpush2.msra.mxu0 0.0
    %1310 = vmatprep.subr.mxu0 0.0
    %1311 = vmatpush2.msra.mxu0 0.0
    %1312 = vmatprep.subr.mxu0 0.0
    %1313 = vmatpush2.msra.mxu0 0.0
    %1314 = vmatprep.subr.mxu0 0.0
    %1315 = vmatpush2.msra.mxu0 0.0
    %1316 = vmatprep.subr.mxu0 0.0
    %1317 = vmatpush2.msra.mxu0 0.0
    %1318 = vmatprep.subr.mxu0 0.0
    %1319 = vmatpush2.msra.mxu0 0.0
    %1320 = vmatprep.subr.mxu0 0.0
    %1321 = vmatpush2.msra.mxu0 0.0
    %1322 = vmatprep.subr.mxu0 0.0
    %1323 = vmatpush2.msra.mxu0 0.0
    %1324 = vmatprep.subr.mxu0 0.0
    %1325 = vmatpush2.msra.mxu0 0.0
    %1326 = vmatprep.subr.mxu0 0.0
    %1327 = vmatpush2.msra.mxu0 0.0
    %1328 = vmatprep.mubr.f32.mxu0 0.0
    %1329 = vmatmul.mubr.f32.gmra.mxu0 %v721
    %v1330 = vpop.f32.mrf.mxu0
    %v1331 = vadd.f32 %v580, %v1330
    %v1332 = vpop.f32.mrf.mxu0
    %v1333 = vadd.f32 %v584, %v1332
    %1334 = vdwg.mxu0
    %1335 = vmatprep.subr.mxu0 0.0
    %1336 = vmatpush1.msra.mxu0 0.0
    %1337 = vmatprep.subr.mxu0 0.0
    %1338 = vmatpush1.msra.mxu0 0.0
    %1339 = vmatprep.subr.mxu0 0.0
    %1340 = vmatpush1.msra.mxu0 0.0
    %1341 = vmatprep.subr.mxu0 0.0
    %1342 = vmatpush1.msra.mxu0 0.0
    %1343 = vmatprep.subr.mxu0 0.0
    %1344 = vmatpush1.msra.mxu0 0.0
    %1345 = vmatprep.subr.mxu0 0.0
    %1346 = vmatpush1.msra.mxu0 0.0
    %1347 = vmatprep.subr.mxu0 0.0
    %1348 = vmatpush1.msra.mxu0 0.0
    %1349 = vmatprep.subr.mxu0 0.0
    %1350 = vmatpush1.msra.mxu0 0.0
    %1351 = vmatprep.subr.mxu0 0.0
    %1352 = vmatpush1.msra.mxu0 0.0
    %1353 = vmatprep.subr.mxu0 0.0
    %1354 = vmatpush1.msra.mxu0 0.0
    %1355 = vmatprep.subr.mxu0 0.0
    %1356 = vmatpush1.msra.mxu0 0.0
    %1357 = vmatprep.subr.mxu0 0.0
    %1358 = vmatpush1.msra.mxu0 0.0
    %1359 = vmatprep.subr.mxu0 0.0
    %1360 = vmatpush1.msra.mxu0 0.0
    %1361 = vmatprep.subr.mxu0 0.0
    %1362 = vmatpush1.msra.mxu0 0.0
    %1363 = vmatprep.subr.mxu0 %v770
    %1364 = vmatpush1.msra.mxu0 %v767
    %1365 = vmatprep.subr.mxu0 %v458
    %1366 = vmatpush1.msra.mxu0 %v457
    %1367 = vmatprep.subr.mxu0 0.0
    %1368 = vmatpush2.msra.mxu0 0.0
    %1369 = vmatprep.subr.mxu0 0.0
    %1370 = vmatpush2.msra.mxu0 0.0
    %1371 = vmatprep.subr.mxu0 0.0
    %1372 = vmatpush2.msra.mxu0 0.0
    %1373 = vmatprep.subr.mxu0 0.0
    %1374 = vmatpush2.msra.mxu0 0.0
    %1375 = vmatprep.subr.mxu0 0.0
    %1376 = vmatpush2.msra.mxu0 0.0
    %1377 = vmatprep.subr.mxu0 0.0
    %1378 = vmatpush2.msra.mxu0 0.0
    %1379 = vmatprep.subr.mxu0 0.0
    %1380 = vmatpush2.msra.mxu0 0.0
    %1381 = vmatprep.subr.mxu0 0.0
    %1382 = vmatpush2.msra.mxu0 0.0
    %1383 = vmatprep.subr.mxu0 0.0
    %1384 = vmatpush2.msra.mxu0 0.0
    %1385 = vmatprep.subr.mxu0 0.0
    %1386 = vmatpush2.msra.mxu0 0.0
    %1387 = vmatprep.subr.mxu0 0.0
    %1388 = vmatpush2.msra.mxu0 0.0
    %1389 = vmatprep.subr.mxu0 0.0
    %1390 = vmatpush2.msra.mxu0 0.0
    %1391 = vmatprep.subr.mxu0 0.0
    %1392 = vmatpush2.msra.mxu0 0.0
    %1393 = vmatprep.subr.mxu0 0.0
    %1394 = vmatpush2.msra.mxu0 0.0
    %1395 = vmatprep.subr.mxu0 0.0
    %1396 = vmatpush2.msra.mxu0 0.0
    %1397 = vmatprep.subr.mxu0 0.0
    %1398 = vmatpush2.msra.mxu0 0.0
    %1399 = vmatprep.mubr.f32.mxu0 0.0
    %1400 = vmatmul.mubr.f32.gmra.mxu0 %v721
    %v1401 = vpop.f32.mrf.mxu0
    %v1402 = vadd.f32 %v588, %v1401
    %v1403 = vpop.f32.mrf.mxu0
    %v1404 = vadd.f32 %v592, %v1403
    %1405 = vdwg.mxu0
    %1406 = vmatprep.subr.mxu0 0.0
    %1407 = vmatpush1.msra.mxu0 0.0
    %1408 = vmatprep.subr.mxu0 0.0
    %1409 = vmatpush1.msra.mxu0 0.0
    %1410 = vmatprep.subr.mxu0 0.0
    %1411 = vmatpush1.msra.mxu0 0.0
    %1412 = vmatprep.subr.mxu0 0.0
    %1413 = vmatpush1.msra.mxu0 0.0
    %1414 = vmatprep.subr.mxu0 0.0
    %1415 = vmatpush1.msra.mxu0 0.0
    %1416 = vmatprep.subr.mxu0 0.0
    %1417 = vmatpush1.msra.mxu0 0.0
    %1418 = vmatprep.subr.mxu0 0.0
    %1419 = vmatpush1.msra.mxu0 0.0
    %1420 = vmatprep.subr.mxu0 0.0
    %1421 = vmatpush1.msra.mxu0 0.0
    %1422 = vmatprep.subr.mxu0 0.0
    %1423 = vmatpush1.msra.mxu0 0.0
    %1424 = vmatprep.subr.mxu0 0.0
    %1425 = vmatpush1.msra.mxu0 0.0
    %1426 = vmatprep.subr.mxu0 0.0
    %1427 = vmatpush1.msra.mxu0 0.0
    %1428 = vmatprep.subr.mxu0 0.0
    %1429 = vmatpush1.msra.mxu0 0.0
    %1430 = vmatprep.subr.mxu0 0.0
    %1431 = vmatpush1.msra.mxu0 0.0
    %1432 = vmatprep.subr.mxu0 0.0
    %1433 = vmatpush1.msra.mxu0 0.0
    %1434 = vmatprep.subr.mxu0 %v776
    %1435 = vmatpush1.msra.mxu0 %v773
    %1436 = vmatprep.subr.mxu0 %v460
    %1437 = vmatpush1.msra.mxu0 %v459
    %1438 = vmatprep.subr.mxu0 0.0
    %1439 = vmatpush2.msra.mxu0 0.0
    %1440 = vmatprep.subr.mxu0 0.0
    %1441 = vmatpush2.msra.mxu0 0.0
    %1442 = vmatprep.subr.mxu0 0.0
    %1443 = vmatpush2.msra.mxu0 0.0
    %1444 = vmatprep.subr.mxu0 0.0
    %1445 = vmatpush2.msra.mxu0 0.0
    %1446 = vmatprep.subr.mxu0 0.0
    %1447 = vmatpush2.msra.mxu0 0.0
    %1448 = vmatprep.subr.mxu0 0.0
    %1449 = vmatpush2.msra.mxu0 0.0
    %1450 = vmatprep.subr.mxu0 0.0
    %1451 = vmatpush2.msra.mxu0 0.0
    %1452 = vmatprep.subr.mxu0 0.0
    %1453 = vmatpush2.msra.mxu0 0.0
    %1454 = vmatprep.subr.mxu0 0.0
    %1455 = vmatpush2.msra.mxu0 0.0
    %1456 = vmatprep.subr.mxu0 0.0
    %1457 = vmatpush2.msra.mxu0 0.0
    %1458 = vmatprep.subr.mxu0 0.0
    %1459 = vmatpush2.msra.mxu0 0.0
    %1460 = vmatprep.subr.mxu0 0.0
    %1461 = vmatpush2.msra.mxu0 0.0
    %1462 = vmatprep.subr.mxu0 0.0
    %1463 = vmatpush2.msra.mxu0 0.0
    %1464 = vmatprep.subr.mxu0 0.0
    %1465 = vmatpush2.msra.mxu0 0.0
    %1466 = vmatprep.subr.mxu0 0.0
    %1467 = vmatpush2.msra.mxu0 0.0
    %1468 = vmatprep.subr.mxu0 0.0
    %1469 = vmatpush2.msra.mxu0 0.0
    %1470 = vmatprep.mubr.f32.mxu0 0.0
    %1471 = vmatmul.mubr.f32.gmra.mxu0 %v721
    %v1472 = vpop.f32.mrf.mxu0
    %v1473 = vadd.f32 %v596, %v1472
    %v1474 = vpop.f32.mrf.mxu0
    %v1475 = vadd.f32 %v600, %v1474
    %1476 = vdwg.mxu0
    %1477 = vmatprep.subr.mxu0 0.0
    %1478 = vmatpush1.msra.mxu0 0.0
    %1479 = vmatprep.subr.mxu0 0.0
    %1480 = vmatpush1.msra.mxu0 0.0
    %1481 = vmatprep.subr.mxu0 0.0
    %1482 = vmatpush1.msra.mxu0 0.0
    %1483 = vmatprep.subr.mxu0 0.0
    %1484 = vmatpush1.msra.mxu0 0.0
    %1485 = vmatprep.subr.mxu0 0.0
    %1486 = vmatpush1.msra.mxu0 0.0
    %1487 = vmatprep.subr.mxu0 0.0
    %1488 = vmatpush1.msra.mxu0 0.0
    %1489 = vmatprep.subr.mxu0 0.0
    %1490 = vmatpush1.msra.mxu0 0.0
    %1491 = vmatprep.subr.mxu0 0.0
    %1492 = vmatpush1.msra.mxu0 0.0
    %1493 = vmatprep.subr.mxu0 0.0
    %1494 = vmatpush1.msra.mxu0 0.0
    %1495 = vmatprep.subr.mxu0 0.0
    %1496 = vmatpush1.msra.mxu0 0.0
    %1497 = vmatprep.subr.mxu0 0.0
    %1498 = vmatpush1.msra.mxu0 0.0
    %1499 = vmatprep.subr.mxu0 0.0
    %1500 = vmatpush1.msra.mxu0 0.0
    %1501 = vmatprep.subr.mxu0 0.0
    %1502 = vmatpush1.msra.mxu0 0.0
    %1503 = vmatprep.subr.mxu0 0.0
    %1504 = vmatpush1.msra.mxu0 0.0
    %1505 = vmatprep.subr.mxu0 %v782
    %1506 = vmatpush1.msra.mxu0 %v779
    %1507 = vmatprep.subr.mxu0 %v462
    %1508 = vmatpush1.msra.mxu0 %v461
    %1509 = vmatprep.subr.mxu0 0.0
    %1510 = vmatpush2.msra.mxu0 0.0
    %1511 = vmatprep.subr.mxu0 0.0
    %1512 = vmatpush2.msra.mxu0 0.0
    %1513 = vmatprep.subr.mxu0 0.0
    %1514 = vmatpush2.msra.mxu0 0.0
    %1515 = vmatprep.subr.mxu0 0.0
    %1516 = vmatpush2.msra.mxu0 0.0
    %1517 = vmatprep.subr.mxu0 0.0
    %1518 = vmatpush2.msra.mxu0 0.0
    %1519 = vmatprep.subr.mxu0 0.0
    %1520 = vmatpush2.msra.mxu0 0.0
    %1521 = vmatprep.subr.mxu0 0.0
    %1522 = vmatpush2.msra.mxu0 0.0
    %1523 = vmatprep.subr.mxu0 0.0
    %1524 = vmatpush2.msra.mxu0 0.0
    %1525 = vmatprep.subr.mxu0 0.0
    %1526 = vmatpush2.msra.mxu0 0.0
    %1527 = vmatprep.subr.mxu0 0.0
    %1528 = vmatpush2.msra.mxu0 0.0
    %1529 = vmatprep.subr.mxu0 0.0
    %1530 = vmatpush2.msra.mxu0 0.0
    %1531 = vmatprep.subr.mxu0 0.0
    %1532 = vmatpush2.msra.mxu0 0.0
    %1533 = vmatprep.subr.mxu0 0.0
    %1534 = vmatpush2.msra.mxu0 0.0
    %1535 = vmatprep.subr.mxu0 0.0
    %1536 = vmatpush2.msra.mxu0 0.0
    %1537 = vmatprep.subr.mxu0 0.0
    %1538 = vmatpush2.msra.mxu0 0.0
    %1539 = vmatprep.subr.mxu0 0.0
    %1540 = vmatpush2.msra.mxu0 0.0
    %1541 = vmatprep.mubr.f32.mxu0 0.0
    %1542 = vmatmul.mubr.f32.gmra.mxu0 %v721
    %v1543 = vpop.f32.mrf.mxu0
    %v1544 = vadd.f32 %v604, %v1543
    %v1545 = vpop.f32.mrf.mxu0
    %v1546 = vadd.f32 %v608, %v1545
    %1547 = vdwg.mxu0
    %1548 = vmatprep.subr.mxu0 0.0
    %1549 = vmatpush1.msra.mxu0 0.0
    %1550 = vmatprep.subr.mxu0 0.0
    %1551 = vmatpush1.msra.mxu0 0.0
    %1552 = vmatprep.subr.mxu0 0.0
    %1553 = vmatpush1.msra.mxu0 0.0
    %1554 = vmatprep.subr.mxu0 0.0
    %1555 = vmatpush1.msra.mxu0 0.0
    %1556 = vmatprep.subr.mxu0 0.0
    %1557 = vmatpush1.msra.mxu0 0.0
    %1558 = vmatprep.subr.mxu0 0.0
    %1559 = vmatpush1.msra.mxu0 0.0
    %1560 = vmatprep.subr.mxu0 0.0
    %1561 = vmatpush1.msra.mxu0 0.0
    %1562 = vmatprep.subr.mxu0 0.0
    %1563 = vmatpush1.msra.mxu0 0.0
    %1564 = vmatprep.subr.mxu0 0.0
    %1565 = vmatpush1.msra.mxu0 0.0
    %1566 = vmatprep.subr.mxu0 0.0
    %1567 = vmatpush1.msra.mxu0 0.0
    %1568 = vmatprep.subr.mxu0 0.0
    %1569 = vmatpush1.msra.mxu0 0.0
    %1570 = vmatprep.subr.mxu0 0.0
    %1571 = vmatpush1.msra.mxu0 0.0
    %1572 = vmatprep.subr.mxu0 0.0
    %1573 = vmatpush1.msra.mxu0 0.0
    %1574 = vmatprep.subr.mxu0 0.0
    %1575 = vmatpush1.msra.mxu0 0.0
    %1576 = vmatprep.subr.mxu0 %v788
    %1577 = vmatpush1.msra.mxu0 %v785
    %1578 = vmatprep.subr.mxu0 %v464
    %1579 = vmatpush1.msra.mxu0 %v463
    %1580 = vmatprep.subr.mxu0 0.0
    %1581 = vmatpush2.msra.mxu0 0.0
    %1582 = vmatprep.subr.mxu0 0.0
    %1583 = vmatpush2.msra.mxu0 0.0
    %1584 = vmatprep.subr.mxu0 0.0
    %1585 = vmatpush2.msra.mxu0 0.0
    %1586 = vmatprep.subr.mxu0 0.0
    %1587 = vmatpush2.msra.mxu0 0.0
    %1588 = vmatprep.subr.mxu0 0.0
    %1589 = vmatpush2.msra.mxu0 0.0
    %1590 = vmatprep.subr.mxu0 0.0
    %1591 = vmatpush2.msra.mxu0 0.0
    %1592 = vmatprep.subr.mxu0 0.0
    %1593 = vmatpush2.msra.mxu0 0.0
    %1594 = vmatprep.subr.mxu0 0.0
    %1595 = vmatpush2.msra.mxu0 0.0
    %1596 = vmatprep.subr.mxu0 0.0
    %1597 = vmatpush2.msra.mxu0 0.0
    %1598 = vmatprep.subr.mxu0 0.0
    %1599 = vmatpush2.msra.mxu0 0.0
    %1600 = vmatprep.subr.mxu0 0.0
    %1601 = vmatpush2.msra.mxu0 0.0
    %1602 = vmatprep.subr.mxu0 0.0
    %1603 = vmatpush2.msra.mxu0 0.0
    %1604 = vmatprep.subr.mxu0 0.0
    %1605 = vmatpush2.msra.mxu0 0.0
    %1606 = vmatprep.subr.mxu0 0.0
    %1607 = vmatpush2.msra.mxu0 0.0
    %1608 = vmatprep.subr.mxu0 0.0
    %1609 = vmatpush2.msra.mxu0 0.0
    %1610 = vmatprep.subr.mxu0 0.0
    %1611 = vmatpush2.msra.mxu0 0.0
    %1612 = vmatprep.mubr.f32.mxu0 0.0
    %1613 = vmatmul.mubr.f32.gmra.mxu0 %v721
    %v1614 = vpop.f32.mrf.mxu0
    %v1615 = vadd.f32 %v612, %v1614
    %v1616 = vpop.f32.mrf.mxu0
    %v1617 = vadd.f32 %v616, %v1616
    %1618 = vdwg.mxu0
    %1619 = vmatprep.subr.mxu0 0.0
    %1620 = vmatpush1.msra.mxu0 0.0
    %1621 = vmatprep.subr.mxu0 0.0
    %1622 = vmatpush1.msra.mxu0 0.0
    %1623 = vmatprep.subr.mxu0 0.0
    %1624 = vmatpush1.msra.mxu0 0.0
    %1625 = vmatprep.subr.mxu0 0.0
    %1626 = vmatpush1.msra.mxu0 0.0
    %1627 = vmatprep.subr.mxu0 0.0
    %1628 = vmatpush1.msra.mxu0 0.0
    %1629 = vmatprep.subr.mxu0 0.0
    %1630 = vmatpush1.msra.mxu0 0.0
    %1631 = vmatprep.subr.mxu0 0.0
    %1632 = vmatpush1.msra.mxu0 0.0
    %1633 = vmatprep.subr.mxu0 0.0
    %1634 = vmatpush1.msra.mxu0 0.0
    %1635 = vmatprep.subr.mxu0 0.0
    %1636 = vmatpush1.msra.mxu0 0.0
    %1637 = vmatprep.subr.mxu0 0.0
    %1638 = vmatpush1.msra.mxu0 0.0
    %1639 = vmatprep.subr.mxu0 0.0
    %1640 = vmatpush1.msra.mxu0 0.0
    %1641 = vmatprep.subr.mxu0 0.0
    %1642 = vmatpush1.msra.mxu0 0.0
    %1643 = vmatprep.subr.mxu0 0.0
    %1644 = vmatpush1.msra.mxu0 0.0
    %1645 = vmatprep.subr.mxu0 0.0
    %1646 = vmatpush1.msra.mxu0 0.0
    %1647 = vmatprep.subr.mxu0 %v794
    %1648 = vmatpush1.msra.mxu0 %v791
    %1649 = vmatprep.subr.mxu0 %v466
    %1650 = vmatpush1.msra.mxu0 %v465
    %1651 = vmatprep.subr.mxu0 0.0
    %1652 = vmatpush2.msra.mxu0 0.0
    %1653 = vmatprep.subr.mxu0 0.0
    %1654 = vmatpush2.msra.mxu0 0.0
    %1655 = vmatprep.subr.mxu0 0.0
    %1656 = vmatpush2.msra.mxu0 0.0
    %1657 = vmatprep.subr.mxu0 0.0
    %1658 = vmatpush2.msra.mxu0 0.0
    %1659 = vmatprep.subr.mxu0 0.0
    %1660 = vmatpush2.msra.mxu0 0.0
    %1661 = vmatprep.subr.mxu0 0.0
    %1662 = vmatpush2.msra.mxu0 0.0
    %1663 = vmatprep.subr.mxu0 0.0
    %1664 = vmatpush2.msra.mxu0 0.0
    %1665 = vmatprep.subr.mxu0 0.0
    %1666 = vmatpush2.msra.mxu0 0.0
    %1667 = vmatprep.subr.mxu0 0.0
    %1668 = vmatpush2.msra.mxu0 0.0
    %1669 = vmatprep.subr.mxu0 0.0
    %1670 = vmatpush2.msra.mxu0 0.0
    %1671 = vmatprep.subr.mxu0 0.0
    %1672 = vmatpush2.msra.mxu0 0.0
    %1673 = vmatprep.subr.mxu0 0.0
    %1674 = vmatpush2.msra.mxu0 0.0
    %1675 = vmatprep.subr.mxu0 0.0
    %1676 = vmatpush2.msra.mxu0 0.0
    %1677 = vmatprep.subr.mxu0 0.0
    %1678 = vmatpush2.msra.mxu0 0.0
    %1679 = vmatprep.subr.mxu0 0.0
    %1680 = vmatpush2.msra.mxu0 0.0
    %1681 = vmatprep.subr.mxu0 0.0
    %1682 = vmatpush2.msra.mxu0 0.0
    %1683 = vmatprep.mubr.f32.mxu0 0.0
    %1684 = vmatmul.mubr.f32.gmra.mxu0 %v721
    %v1685 = vpop.f32.mrf.mxu0
    %v1686 = vadd.f32 %v620, %v1685
    %v1687 = vpop.f32.mrf.mxu0
    %v1688 = vadd.f32 %v624, %v1687
    %1689 = vdwg.mxu0
    %1690 = vmatprep.subr.mxu0 0.0
    %1691 = vmatpush1.msra.mxu0 0.0
    %1692 = vmatprep.subr.mxu0 0.0
    %1693 = vmatpush1.msra.mxu0 0.0
    %1694 = vmatprep.subr.mxu0 0.0
    %1695 = vmatpush1.msra.mxu0 0.0
    %1696 = vmatprep.subr.mxu0 0.0
    %1697 = vmatpush1.msra.mxu0 0.0
    %1698 = vmatprep.subr.mxu0 0.0
    %1699 = vmatpush1.msra.mxu0 0.0
    %1700 = vmatprep.subr.mxu0 0.0
    %1701 = vmatpush1.msra.mxu0 0.0
    %1702 = vmatprep.subr.mxu0 0.0
    %1703 = vmatpush1.msra.mxu0 0.0
    %1704 = vmatprep.subr.mxu0 0.0
    %1705 = vmatpush1.msra.mxu0 0.0
    %1706 = vmatprep.subr.mxu0 0.0
    %1707 = vmatpush1.msra.mxu0 0.0
    %1708 = vmatprep.subr.mxu0 0.0
    %1709 = vmatpush1.msra.mxu0 0.0
    %1710 = vmatprep.subr.mxu0 0.0
    %1711 = vmatpush1.msra.mxu0 0.0
    %1712 = vmatprep.subr.mxu0 0.0
    %1713 = vmatpush1.msra.mxu0 0.0
    %1714 = vmatprep.subr.mxu0 0.0
    %1715 = vmatpush1.msra.mxu0 0.0
    %1716 = vmatprep.subr.mxu0 0.0
    %1717 = vmatpush1.msra.mxu0 0.0
    %1718 = vmatprep.subr.mxu0 %v800
    %1719 = vmatpush1.msra.mxu0 %v797
    %1720 = vmatprep.subr.mxu0 %v468
    %1721 = vmatpush1.msra.mxu0 %v467
    %1722 = vmatprep.subr.mxu0 0.0
    %1723 = vmatpush2.msra.mxu0 0.0
    %1724 = vmatprep.subr.mxu0 0.0
    %1725 = vmatpush2.msra.mxu0 0.0
    %1726 = vmatprep.subr.mxu0 0.0
    %1727 = vmatpush2.msra.mxu0 0.0
    %1728 = vmatprep.subr.mxu0 0.0
    %1729 = vmatpush2.msra.mxu0 0.0
    %1730 = vmatprep.subr.mxu0 0.0
    %1731 = vmatpush2.msra.mxu0 0.0
    %1732 = vmatprep.subr.mxu0 0.0
    %1733 = vmatpush2.msra.mxu0 0.0
    %1734 = vmatprep.subr.mxu0 0.0
    %1735 = vmatpush2.msra.mxu0 0.0
    %1736 = vmatprep.subr.mxu0 0.0
    %1737 = vmatpush2.msra.mxu0 0.0
    %1738 = vmatprep.subr.mxu0 0.0
    %1739 = vmatpush2.msra.mxu0 0.0
    %1740 = vmatprep.subr.mxu0 0.0
    %1741 = vmatpush2.msra.mxu0 0.0
    %1742 = vmatprep.subr.mxu0 0.0
    %1743 = vmatpush2.msra.mxu0 0.0
    %1744 = vmatprep.subr.mxu0 0.0
    %1745 = vmatpush2.msra.mxu0 0.0
    %1746 = vmatprep.subr.mxu0 0.0
    %1747 = vmatpush2.msra.mxu0 0.0
    %1748 = vmatprep.subr.mxu0 0.0
    %1749 = vmatpush2.msra.mxu0 0.0
    %1750 = vmatprep.subr.mxu0 0.0
    %1751 = vmatpush2.msra.mxu0 0.0
    %1752 = vmatprep.subr.mxu0 0.0
    %1753 = vmatpush2.msra.mxu0 0.0
    %1754 = vmatprep.mubr.f32.mxu0 0.0
    %1755 = vmatmul.mubr.f32.gmra.mxu0 %v721
    %v1756 = vpop.f32.mrf.mxu0
    %v1757 = vadd.f32 %v628, %v1756
    %v1758 = vpop.f32.mrf.mxu0
    %v1759 = vadd.f32 %v632, %v1758
    %1760 = vdwg.mxu0
    %1761 = vmatprep.subr.mxu0 0.0
    %1762 = vmatpush1.msra.mxu0 0.0
    %1763 = vmatprep.subr.mxu0 0.0
    %1764 = vmatpush1.msra.mxu0 0.0
    %1765 = vmatprep.subr.mxu0 0.0
    %1766 = vmatpush1.msra.mxu0 0.0
    %1767 = vmatprep.subr.mxu0 0.0
    %1768 = vmatpush1.msra.mxu0 0.0
    %1769 = vmatprep.subr.mxu0 0.0
    %1770 = vmatpush1.msra.mxu0 0.0
    %1771 = vmatprep.subr.mxu0 0.0
    %1772 = vmatpush1.msra.mxu0 0.0
    %1773 = vmatprep.subr.mxu0 0.0
    %1774 = vmatpush1.msra.mxu0 0.0
    %1775 = vmatprep.subr.mxu0 0.0
    %1776 = vmatpush1.msra.mxu0 0.0
    %1777 = vmatprep.subr.mxu0 0.0
    %1778 = vmatpush1.msra.mxu0 0.0
    %1779 = vmatprep.subr.mxu0 0.0
    %1780 = vmatpush1.msra.mxu0 0.0
    %1781 = vmatprep.subr.mxu0 0.0
    %1782 = vmatpush1.msra.mxu0 0.0
    %1783 = vmatprep.subr.mxu0 0.0
    %1784 = vmatpush1.msra.mxu0 0.0
    %1785 = vmatprep.subr.mxu0 0.0
    %1786 = vmatpush1.msra.mxu0 0.0
    %1787 = vmatprep.subr.mxu0 0.0
    %1788 = vmatpush1.msra.mxu0 0.0
    %1789 = vmatprep.subr.mxu0 %v806
    %1790 = vmatpush1.msra.mxu0 %v803
    %1791 = vmatprep.subr.mxu0 %v470
    %1792 = vmatpush1.msra.mxu0 %v469
    %1793 = vmatprep.subr.mxu0 0.0
    %1794 = vmatpush2.msra.mxu0 0.0
    %1795 = vmatprep.subr.mxu0 0.0
    %1796 = vmatpush2.msra.mxu0 0.0
    %1797 = vmatprep.subr.mxu0 0.0
    %1798 = vmatpush2.msra.mxu0 0.0
    %1799 = vmatprep.subr.mxu0 0.0
    %1800 = vmatpush2.msra.mxu0 0.0
    %1801 = vmatprep.subr.mxu0 0.0
    %1802 = vmatpush2.msra.mxu0 0.0
    %1803 = vmatprep.subr.mxu0 0.0
    %1804 = vmatpush2.msra.mxu0 0.0
    %1805 = vmatprep.subr.mxu0 0.0
    %1806 = vmatpush2.msra.mxu0 0.0
    %1807 = vmatprep.subr.mxu0 0.0
    %1808 = vmatpush2.msra.mxu0 0.0
    %1809 = vmatprep.subr.mxu0 0.0
    %1810 = vmatpush2.msra.mxu0 0.0
    %1811 = vmatprep.subr.mxu0 0.0
    %1812 = vmatpush2.msra.mxu0 0.0
    %1813 = vmatprep.subr.mxu0 0.0
    %1814 = vmatpush2.msra.mxu0 0.0
    %1815 = vmatprep.subr.mxu0 0.0
    %1816 = vmatpush2.msra.mxu0 0.0
    %1817 = vmatprep.subr.mxu0 0.0
    %1818 = vmatpush2.msra.mxu0 0.0
    %1819 = vmatprep.subr.mxu0 0.0
    %1820 = vmatpush2.msra.mxu0 0.0
    %1821 = vmatprep.subr.mxu0 0.0
    %1822 = vmatpush2.msra.mxu0 0.0
    %1823 = vmatprep.subr.mxu0 0.0
    %1824 = vmatpush2.msra.mxu0 0.0
    %1825 = vmatprep.mubr.f32.mxu0 0.0
    %1826 = vmatmul.mubr.f32.gmra.mxu0 %v721
    %v1827 = vpop.f32.mrf.mxu0
    %v1828 = vadd.f32 %v636, %v1827
    %v1829 = vpop.f32.mrf.mxu0
    %v1830 = vadd.f32 %v640, %v1829
    %1831 = vdwg.mxu0
    %1832 = vmatprep.subr.mxu0 0.0
    %1833 = vmatpush1.msra.mxu0 0.0
    %1834 = vmatprep.subr.mxu0 0.0
    %1835 = vmatpush1.msra.mxu0 0.0
    %1836 = vmatprep.subr.mxu0 0.0
    %1837 = vmatpush1.msra.mxu0 0.0
    %1838 = vmatprep.subr.mxu0 0.0
    %1839 = vmatpush1.msra.mxu0 0.0
    %1840 = vmatprep.subr.mxu0 0.0
    %1841 = vmatpush1.msra.mxu0 0.0
    %1842 = vmatprep.subr.mxu0 0.0
    %1843 = vmatpush1.msra.mxu0 0.0
    %1844 = vmatprep.subr.mxu0 0.0
    %1845 = vmatpush1.msra.mxu0 0.0
    %1846 = vmatprep.subr.mxu0 0.0
    %1847 = vmatpush1.msra.mxu0 0.0
    %1848 = vmatprep.subr.mxu0 0.0
    %1849 = vmatpush1.msra.mxu0 0.0
    %1850 = vmatprep.subr.mxu0 0.0
    %1851 = vmatpush1.msra.mxu0 0.0
    %1852 = vmatprep.subr.mxu0 0.0
    %1853 = vmatpush1.msra.mxu0 0.0
    %1854 = vmatprep.subr.mxu0 0.0
    %1855 = vmatpush1.msra.mxu0 0.0
    %1856 = vmatprep.subr.mxu0 0.0
    %1857 = vmatpush1.msra.mxu0 0.0
    %1858 = vmatprep.subr.mxu0 0.0
    %1859 = vmatpush1.msra.mxu0 0.0
    %1860 = vmatprep.subr.mxu0 %v812
    %1861 = vmatpush1.msra.mxu0 %v809
    %1862 = vmatprep.subr.mxu0 %v472
    %1863 = vmatpush1.msra.mxu0 %v471
    %1864 = vmatprep.subr.mxu0 0.0
    %1865 = vmatpush2.msra.mxu0 0.0
    %1866 = vmatprep.subr.mxu0 0.0
    %1867 = vmatpush2.msra.mxu0 0.0
    %1868 = vmatprep.subr.mxu0 0.0
    %1869 = vmatpush2.msra.mxu0 0.0
    %1870 = vmatprep.subr.mxu0 0.0
    %1871 = vmatpush2.msra.mxu0 0.0
    %1872 = vmatprep.subr.mxu0 0.0
    %1873 = vmatpush2.msra.mxu0 0.0
    %1874 = vmatprep.subr.mxu0 0.0
    %1875 = vmatpush2.msra.mxu0 0.0
    %1876 = vmatprep.subr.mxu0 0.0
    %1877 = vmatpush2.msra.mxu0 0.0
    %1878 = vmatprep.subr.mxu0 0.0
    %1879 = vmatpush2.msra.mxu0 0.0
    %1880 = vmatprep.subr.mxu0 0.0
    %1881 = vmatpush2.msra.mxu0 0.0
    %1882 = vmatprep.subr.mxu0 0.0
    %1883 = vmatpush2.msra.mxu0 0.0
    %1884 = vmatprep.subr.mxu0 0.0
    %1885 = vmatpush2.msra.mxu0 0.0
    %1886 = vmatprep.subr.mxu0 0.0
    %1887 = vmatpush2.msra.mxu0 0.0
    %1888 = vmatprep.subr.mxu0 0.0
    %1889 = vmatpush2.msra.mxu0 0.0
    %1890 = vmatprep.subr.mxu0 0.0
    %1891 = vmatpush2.msra.mxu0 0.0
    %1892 = vmatprep.subr.mxu0 0.0
    %1893 = vmatpush2.msra.mxu0 0.0
    %1894 = vmatprep.subr.mxu0 0.0
    %1895 = vmatpush2.msra.mxu0 0.0
    %1896 = vmatprep.mubr.f32.mxu0 0.0
    %1897 = vmatmul.mubr.f32.gmra.mxu0 %v721
    %v1898 = vpop.f32.mrf.mxu0
    %v1899 = vadd.f32 %v644, %v1898
    %v1900 = vpop.f32.mrf.mxu0
    %v1901 = vadd.f32 %v648, %v1900
    %1902 = vdwg.mxu0
    %1903 = vmatprep.subr.mxu0 0.0
    %1904 = vmatpush1.msra.mxu0 0.0
    %1905 = vmatprep.subr.mxu0 0.0
    %1906 = vmatpush1.msra.mxu0 0.0
    %1907 = vmatprep.subr.mxu0 0.0
    %1908 = vmatpush1.msra.mxu0 0.0
    %1909 = vmatprep.subr.mxu0 0.0
    %1910 = vmatpush1.msra.mxu0 0.0
    %1911 = vmatprep.subr.mxu0 0.0
    %1912 = vmatpush1.msra.mxu0 0.0
    %1913 = vmatprep.subr.mxu0 0.0
    %1914 = vmatpush1.msra.mxu0 0.0
    %1915 = vmatprep.subr.mxu0 0.0
    %1916 = vmatpush1.msra.mxu0 0.0
    %1917 = vmatprep.subr.mxu0 0.0
    %1918 = vmatpush1.msra.mxu0 0.0
    %1919 = vmatprep.subr.mxu0 0.0
    %1920 = vmatpush1.msra.mxu0 0.0
    %1921 = vmatprep.subr.mxu0 0.0
    %1922 = vmatpush1.msra.mxu0 0.0
    %1923 = vmatprep.subr.mxu0 0.0
    %1924 = vmatpush1.msra.mxu0 0.0
    %1925 = vmatprep.subr.mxu0 0.0
    %1926 = vmatpush1.msra.mxu0 0.0
    %1927 = vmatprep.subr.mxu0 0.0
    %1928 = vmatpush1.msra.mxu0 0.0
    %1929 = vmatprep.subr.mxu0 0.0
    %1930 = vmatpush1.msra.mxu0 0.0
    %1931 = vmatprep.subr.mxu0 %v818
    %1932 = vmatpush1.msra.mxu0 %v815
    %1933 = vmatprep.subr.mxu0 %v474
    %1934 = vmatpush1.msra.mxu0 %v473
    %1935 = vmatprep.subr.mxu0 0.0
    %1936 = vmatpush2.msra.mxu0 0.0
    %1937 = vmatprep.subr.mxu0 0.0
    %1938 = vmatpush2.msra.mxu0 0.0
    %1939 = vmatprep.subr.mxu0 0.0
    %1940 = vmatpush2.msra.mxu0 0.0
    %1941 = vmatprep.subr.mxu0 0.0
    %1942 = vmatpush2.msra.mxu0 0.0
    %1943 = vmatprep.subr.mxu0 0.0
    %1944 = vmatpush2.msra.mxu0 0.0
    %1945 = vmatprep.subr.mxu0 0.0
    %1946 = vmatpush2.msra.mxu0 0.0
    %1947 = vmatprep.subr.mxu0 0.0
    %1948 = vmatpush2.msra.mxu0 0.0
    %1949 = vmatprep.subr.mxu0 0.0
    %1950 = vmatpush2.msra.mxu0 0.0
    %1951 = vmatprep.subr.mxu0 0.0
    %1952 = vmatpush2.msra.mxu0 0.0
    %1953 = vmatprep.subr.mxu0 0.0
    %1954 = vmatpush2.msra.mxu0 0.0
    %1955 = vmatprep.subr.mxu0 0.0
    %1956 = vmatpush2.msra.mxu0 0.0
    %1957 = vmatprep.subr.mxu0 0.0
    %1958 = vmatpush2.msra.mxu0 0.0
    %1959 = vmatprep.subr.mxu0 0.0
    %1960 = vmatpush2.msra.mxu0 0.0
    %1961 = vmatprep.subr.mxu0 0.0
    %1962 = vmatpush2.msra.mxu0 0.0
    %1963 = vmatprep.subr.mxu0 0.0
    %1964 = vmatpush2.msra.mxu0 0.0
    %1965 = vmatprep.subr.mxu0 0.0
    %1966 = vmatpush2.msra.mxu0 0.0
    %1967 = vmatprep.mubr.f32.mxu0 0.0
    %1968 = vmatmul.mubr.f32.gmra.mxu0 %v721
    %v1969 = vpop.f32.mrf.mxu0
    %v1970 = vadd.f32 %v652, %v1969
    %v1971 = vpop.f32.mrf.mxu0
    %v1972 = vadd.f32 %v656, %v1971
    %1973 = vdwg.mxu0
    %1974 = vmatprep.subr.mxu0 0.0
    %1975 = vmatpush1.msra.mxu0 0.0
    %1976 = vmatprep.subr.mxu0 0.0
    %1977 = vmatpush1.msra.mxu0 0.0
    %1978 = vmatprep.subr.mxu0 0.0
    %1979 = vmatpush1.msra.mxu0 0.0
    %1980 = vmatprep.subr.mxu0 0.0
    %1981 = vmatpush1.msra.mxu0 0.0
    %1982 = vmatprep.subr.mxu0 0.0
    %1983 = vmatpush1.msra.mxu0 0.0
    %1984 = vmatprep.subr.mxu0 0.0
    %1985 = vmatpush1.msra.mxu0 0.0
    %1986 = vmatprep.subr.mxu0 0.0
    %1987 = vmatpush1.msra.mxu0 0.0
    %1988 = vmatprep.subr.mxu0 0.0
    %1989 = vmatpush1.msra.mxu0 0.0
    %1990 = vmatprep.subr.mxu0 0.0
    %1991 = vmatpush1.msra.mxu0 0.0
    %1992 = vmatprep.subr.mxu0 0.0
    %1993 = vmatpush1.msra.mxu0 0.0
    %1994 = vmatprep.subr.mxu0 0.0
    %1995 = vmatpush1.msra.mxu0 0.0
    %1996 = vmatprep.subr.mxu0 0.0
    %1997 = vmatpush1.msra.mxu0 0.0
    %1998 = vmatprep.subr.mxu0 0.0
    %1999 = vmatpush1.msra.mxu0 0.0
    %2000 = vmatprep.subr.mxu0 0.0
    %2001 = vmatpush1.msra.mxu0 0.0
    %2002 = vmatprep.subr.mxu0 %v824
    %2003 = vmatpush1.msra.mxu0 %v821
    %2004 = vmatprep.subr.mxu0 %v476
    %2005 = vmatpush1.msra.mxu0 %v475
    %2006 = vmatprep.subr.mxu0 0.0
    %2007 = vmatpush2.msra.mxu0 0.0
    %2008 = vmatprep.subr.mxu0 0.0
    %2009 = vmatpush2.msra.mxu0 0.0
    %2010 = vmatprep.subr.mxu0 0.0
    %2011 = vmatpush2.msra.mxu0 0.0
    %2012 = vmatprep.subr.mxu0 0.0
    %2013 = vmatpush2.msra.mxu0 0.0
    %2014 = vmatprep.subr.mxu0 0.0
    %2015 = vmatpush2.msra.mxu0 0.0
    %2016 = vmatprep.subr.mxu0 0.0
    %2017 = vmatpush2.msra.mxu0 0.0
    %2018 = vmatprep.subr.mxu0 0.0
    %2019 = vmatpush2.msra.mxu0 0.0
    %2020 = vmatprep.subr.mxu0 0.0
    %2021 = vmatpush2.msra.mxu0 0.0
    %2022 = vmatprep.subr.mxu0 0.0
    %2023 = vmatpush2.msra.mxu0 0.0
    %2024 = vmatprep.subr.mxu0 0.0
    %2025 = vmatpush2.msra.mxu0 0.0
    %2026 = vmatprep.subr.mxu0 0.0
    %2027 = vmatpush2.msra.mxu0 0.0
    %2028 = vmatprep.subr.mxu0 0.0
    %2029 = vmatpush2.msra.mxu0 0.0
    %2030 = vmatprep.subr.mxu0 0.0
    %2031 = vmatpush2.msra.mxu0 0.0
    %2032 = vmatprep.subr.mxu0 0.0
    %2033 = vmatpush2.msra.mxu0 0.0
    %2034 = vmatprep.subr.mxu0 0.0
    %2035 = vmatpush2.msra.mxu0 0.0
    %2036 = vmatprep.subr.mxu0 0.0
    %2037 = vmatpush2.msra.mxu0 0.0
    %2038 = vmatprep.mubr.f32.mxu0 0.0
    %2039 = vmatmul.mubr.f32.gmra.mxu0 %v721
    %v2040 = vpop.f32.mrf.mxu0
    %v2041 = vadd.f32 %v660, %v2040
    %v2042 = vpop.f32.mrf.mxu0
    %v2043 = vadd.f32 %v664, %v2042
    %2044 = vdwg.mxu0
    %2045 = vmatprep.subr.mxu0 0.0
    %2046 = vmatpush1.msra.mxu0 0.0
    %2047 = vmatprep.subr.mxu0 0.0
    %2048 = vmatpush1.msra.mxu0 0.0
    %2049 = vmatprep.subr.mxu0 0.0
    %2050 = vmatpush1.msra.mxu0 0.0
    %2051 = vmatprep.subr.mxu0 0.0
    %2052 = vmatpush1.msra.mxu0 0.0
    %2053 = vmatprep.subr.mxu0 0.0
    %2054 = vmatpush1.msra.mxu0 0.0
    %2055 = vmatprep.subr.mxu0 0.0
    %2056 = vmatpush1.msra.mxu0 0.0
    %2057 = vmatprep.subr.mxu0 0.0
    %2058 = vmatpush1.msra.mxu0 0.0
    %2059 = vmatprep.subr.mxu0 0.0
    %2060 = vmatpush1.msra.mxu0 0.0
    %2061 = vmatprep.subr.mxu0 0.0
    %2062 = vmatpush1.msra.mxu0 0.0
    %2063 = vmatprep.subr.mxu0 0.0
    %2064 = vmatpush1.msra.mxu0 0.0
    %2065 = vmatprep.subr.mxu0 0.0
    %2066 = vmatpush1.msra.mxu0 0.0
    %2067 = vmatprep.subr.mxu0 0.0
    %2068 = vmatpush1.msra.mxu0 0.0
    %2069 = vmatprep.subr.mxu0 0.0
    %2070 = vmatpush1.msra.mxu0 0.0
    %2071 = vmatprep.subr.mxu0 0.0
    %2072 = vmatpush1.msra.mxu0 0.0
    %2073 = vmatprep.subr.mxu0 %v830
    %2074 = vmatpush1.msra.mxu0 %v827
    %2075 = vmatprep.subr.mxu0 %v478
    %2076 = vmatpush1.msra.mxu0 %v477
    %2077 = vmatprep.subr.mxu0 0.0
    %2078 = vmatpush2.msra.mxu0 0.0
    %2079 = vmatprep.subr.mxu0 0.0
    %2080 = vmatpush2.msra.mxu0 0.0
    %2081 = vmatprep.subr.mxu0 0.0
    %2082 = vmatpush2.msra.mxu0 0.0
    %2083 = vmatprep.subr.mxu0 0.0
    %2084 = vmatpush2.msra.mxu0 0.0
    %2085 = vmatprep.subr.mxu0 0.0
    %2086 = vmatpush2.msra.mxu0 0.0
    %2087 = vmatprep.subr.mxu0 0.0
    %2088 = vmatpush2.msra.mxu0 0.0
    %2089 = vmatprep.subr.mxu0 0.0
    %2090 = vmatpush2.msra.mxu0 0.0
    %2091 = vmatprep.subr.mxu0 0.0
    %2092 = vmatpush2.msra.mxu0 0.0
    %2093 = vmatprep.subr.mxu0 0.0
    %2094 = vmatpush2.msra.mxu0 0.0
    %2095 = vmatprep.subr.mxu0 0.0
    %2096 = vmatpush2.msra.mxu0 0.0
    %2097 = vmatprep.subr.mxu0 0.0
    %2098 = vmatpush2.msra.mxu0 0.0
    %2099 = vmatprep.subr.mxu0 0.0
    %2100 = vmatpush2.msra.mxu0 0.0
    %2101 = vmatprep.subr.mxu0 0.0
    %2102 = vmatpush2.msra.mxu0 0.0
    %2103 = vmatprep.subr.mxu0 0.0
    %2104 = vmatpush2.msra.mxu0 0.0
    %2105 = vmatprep.subr.mxu0 0.0
    %2106 = vmatpush2.msra.mxu0 0.0
    %2107 = vmatprep.subr.mxu0 0.0
    %2108 = vmatpush2.msra.mxu0 0.0
    %2109 = vmatprep.mubr.f32.mxu0 0.0
    %2110 = vmatmul.mubr.f32.gmra.mxu0 %v721
    %v2111 = vpop.f32.mrf.mxu0
    %v2112 = vadd.f32 %v668, %v2111
    %v2113 = vpop.f32.mrf.mxu0
    %v2114 = vadd.f32 %v672, %v2113
    %2115 = vdwg.mxu0
    %2116 = vmatprep.subr.mxu0 0.0
    %2117 = vmatpush1.msra.mxu0 0.0
    %2118 = vmatprep.subr.mxu0 0.0
    %2119 = vmatpush1.msra.mxu0 0.0
    %2120 = vmatprep.subr.mxu0 0.0
    %2121 = vmatpush1.msra.mxu0 0.0
    %2122 = vmatprep.subr.mxu0 0.0
    %2123 = vmatpush1.msra.mxu0 0.0
    %2124 = vmatprep.subr.mxu0 0.0
    %2125 = vmatpush1.msra.mxu0 0.0
    %2126 = vmatprep.subr.mxu0 0.0
    %2127 = vmatpush1.msra.mxu0 0.0
    %2128 = vmatprep.subr.mxu0 0.0
    %2129 = vmatpush1.msra.mxu0 0.0
    %2130 = vmatprep.subr.mxu0 0.0
    %2131 = vmatpush1.msra.mxu0 0.0
    %2132 = vmatprep.subr.mxu0 0.0
    %2133 = vmatpush1.msra.mxu0 0.0
    %2134 = vmatprep.subr.mxu0 0.0
    %2135 = vmatpush1.msra.mxu0 0.0
    %2136 = vmatprep.subr.mxu0 0.0
    %2137 = vmatpush1.msra.mxu0 0.0
    %2138 = vmatprep.subr.mxu0 0.0
    %2139 = vmatpush1.msra.mxu0 0.0
    %2140 = vmatprep.subr.mxu0 0.0
    %2141 = vmatpush1.msra.mxu0 0.0
    %2142 = vmatprep.subr.mxu0 0.0
    %2143 = vmatpush1.msra.mxu0 0.0
    %2144 = vmatprep.subr.mxu0 %v836
    %2145 = vmatpush1.msra.mxu0 %v833
    %2146 = vmatprep.subr.mxu0 %v480
    %2147 = vmatpush1.msra.mxu0 %v479
    %2148 = vmatprep.subr.mxu0 0.0
    %2149 = vmatpush2.msra.mxu0 0.0
    %2150 = vmatprep.subr.mxu0 0.0
    %2151 = vmatpush2.msra.mxu0 0.0
    %2152 = vmatprep.subr.mxu0 0.0
    %2153 = vmatpush2.msra.mxu0 0.0
    %2154 = vmatprep.subr.mxu0 0.0
    %2155 = vmatpush2.msra.mxu0 0.0
    %2156 = vmatprep.subr.mxu0 0.0
    %2157 = vmatpush2.msra.mxu0 0.0
    %2158 = vmatprep.subr.mxu0 0.0
    %2159 = vmatpush2.msra.mxu0 0.0
    %2160 = vmatprep.subr.mxu0 0.0
    %2161 = vmatpush2.msra.mxu0 0.0
    %2162 = vmatprep.subr.mxu0 0.0
    %2163 = vmatpush2.msra.mxu0 0.0
    %2164 = vmatprep.subr.mxu0 0.0
    %2165 = vmatpush2.msra.mxu0 0.0
    %2166 = vmatprep.subr.mxu0 0.0
    %2167 = vmatpush2.msra.mxu0 0.0
    %2168 = vmatprep.subr.mxu0 0.0
    %2169 = vmatpush2.msra.mxu0 0.0
    %2170 = vmatprep.subr.mxu0 0.0
    %2171 = vmatpush2.msra.mxu0 0.0
    %2172 = vmatprep.subr.mxu0 0.0
    %2173 = vmatpush2.msra.mxu0 0.0
    %2174 = vmatprep.subr.mxu0 0.0
    %2175 = vmatpush2.msra.mxu0 0.0
    %2176 = vmatprep.subr.mxu0 0.0
    %2177 = vmatpush2.msra.mxu0 0.0
    %2178 = vmatprep.subr.mxu0 0.0
    %2179 = vmatpush2.msra.mxu0 0.0
    %2180 = vmatprep.mubr.f32.mxu0 0.0
    %2181 = vmatmul.mubr.f32.gmra.mxu0 %v721
    %v2182 = vpop.f32.mrf.mxu0
    %v2183 = vadd.f32 %v676, %v2182
    %v2184 = vpop.f32.mrf.mxu0
    %v2185 = vadd.f32 %v680, %v2184
    %2186 = vdwg.mxu0
    %2187 = vst [vmem:[#allocation2] sm:$0xff] %v905
    %2188 = vst [vmem:[#allocation2 + $0x8] sm:$0xff] %v907
    %2189 = vst [vmem:[#allocation2 + $0x10] sm:$0xff] %v976
    %2190 = vst [vmem:[#allocation2 + $0x18] sm:$0xff] %v978
    %2191 = vst [vmem:[#allocation2 + $0x20] sm:$0xff] %v1047
    %2192 = vst [vmem:[#allocation2 + $0x28] sm:$0xff] %v1049
    %2193 = vst [vmem:[#allocation2 + $0x30] sm:$0xff] %v1118
    %2194 = vst [vmem:[#allocation2 + $0x38] sm:$0xff] %v1120
    %2195 = vst [vmem:[#allocation2 + $0x40] sm:$0xff] %v1189
    %2196 = vst [vmem:[#allocation2 + $0x48] sm:$0xff] %v1191
    %2197 = vst [vmem:[#allocation2 + $0x50] sm:$0xff] %v1260
    %2198 = vst [vmem:[#allocation2 + $0x58] sm:$0xff] %v1262
    %2199 = vst [vmem:[#allocation2 + $0x60] sm:$0xff] %v1331
    %2200 = vst [vmem:[#allocation2 + $0x68] sm:$0xff] %v1333
    %2201 = vst [vmem:[#allocation2 + $0x70] sm:$0xff] %v1402
    %2202 = vst [vmem:[#allocation2 + $0x78] sm:$0xff] %v1404
    %2203 = vst [vmem:[#allocation2 + $0x80] sm:$0xff] %v1473
    %2204 = vst [vmem:[#allocation2 + $0x88] sm:$0xff] %v1475
    %2205 = vst [vmem:[#allocation2 + $0x90] sm:$0xff] %v1544
    %2206 = vst [vmem:[#allocation2 + $0x98] sm:$0xff] %v1546
    %2207 = vst [vmem:[#allocation2 + $0xa0] sm:$0xff] %v1615
    %2208 = vst [vmem:[#allocation2 + $0xa8] sm:$0xff] %v1617
    %2209 = vst [vmem:[#allocation2 + $0xb0] sm:$0xff] %v1686
    %2210 = vst [vmem:[#allocation2 + $0xb8] sm:$0xff] %v1688
    %2211 = vst [vmem:[#allocation2 + $0xc0] sm:$0xff] %v1757
    %2212 = vst [vmem:[#allocation2 + $0xc8] sm:$0xff] %v1759
    %2213 = vst [vmem:[#allocation2 + $0xd0] sm:$0xff] %v1828
    %2214 = vst [vmem:[#allocation2 + $0xd8] sm:$0xff] %v1830
    %2215 = vst [vmem:[#allocation2 + $0xe0] sm:$0xff] %v1899
    %2216 = vst [vmem:[#allocation2 + $0xe8] sm:$0xff] %v1901
    %2217 = vst [vmem:[#allocation2 + $0xf0] sm:$0xff] %v1970
    %2218 = vst [vmem:[#allocation2 + $0xf8] sm:$0xff] %v1972
    %2219 = vst [vmem:[#allocation2 + $0x100] sm:$0xff] %v2041
    %2220 = vst [vmem:[#allocation2 + $0x108] sm:$0xff] %v2043
    %2221 = vst [vmem:[#allocation2 + $0x110] sm:$0xff] %v2112
    %2222 = vst [vmem:[#allocation2 + $0x118] sm:$0xff] %v2114
    %2223 = vst [vmem:[#allocation2 + $0x120] sm:$0xff] %v2183
    %vm2224 = vcmask 195584
    %2225 = vst.msk [vmem:[#allocation2 + $0x128] sm:$0xff] %vm2224, %v2185
    // Predicated region
    $region22: #{_forward_impl.1} parent=1 // pred_check
      _
    $region23: #{_forward_impl.1} parent=1 // pred_check_branch
      %2227 = sbr.rel (0) target = $region25
    $region24: #{_forward_impl.1} parent=1 // pred_region
      %s2229 = ssub.s32 4864, 4864
      %2230 = vsyncadd [#allocation3], %s2229
      %s2232 = sshll.u32 [#allocation2], 4
      %s2233 = int_to_ptr.vmem [resolvable:$true] %s2232
      %2235 = dma.vmem_to_hbm [thread:$0]  %s2233, 4864, %s5, [#allocation3]
    $region25: #{_forward_impl.1} parent=1 // pred_fallthru
      _
    // Predicated region
    $region26: #{_forward_impl.1} parent=1 // pred_check
      _
    $region27: #{_forward_impl.1} parent=1 // pred_check_branch
      %2237 = sbr.rel (0) target = $region29
    $region28: #{_forward_impl.1} parent=1 // pred_region
      %2238 = dma.done [#allocation3], 4864
    $region29: #{_forward_impl.1} parent=1 // pred_fallthru
      _
    %2239 = vsyncpa [#allocation3], 1

</llo_original>
